<compile_context>
chip_gen: v5e
topology: v5e:2x2
jax: 0.10.0
libtpu: 0.0.40
codegen_flags: <defaults>
</compile_context>

<pallas_src>
import functools
import math

import jax
import jax.numpy as jnp
from jax import lax
from jax.experimental import pallas as pl
from jax.experimental.pallas import tpu as pltpu


CFG = dict(vocab=100, hidden=32, heads=2, layers=2, intermediate=64,
           max_pos=16, type_vocab=2, num_labels=3)


# ----------------------------- matmul helpers -----------------------------

def _mm(a, b):
    """MXU matmul: bf16 operands, f32 accumulation."""
    return jnp.dot(a.astype(jnp.bfloat16), b.astype(jnp.bfloat16),
                   preferred_element_type=jnp.float32)


def _mm_t(a, b):
    """a @ b.T via dot_general (no materialized transpose); bf16 ops, f32 acc."""
    return lax.dot_general(a.astype(jnp.bfloat16), b.astype(jnp.bfloat16),
                           dimension_numbers=(((1,), (1,)), ((), ())),
                           preferred_element_type=jnp.float32)


# ----------------------------- fused kernel -----------------------------

def _bert_fused_kernel(
    # inputs
    emb_ref, mask_ref, emb_ln_g_ref, emb_ln_b_ref,
    wqkv_ref, bqkv_ref, wo_ref, bo_ref, ln1_g_ref, ln1_b_ref,
    wi_ref, bi_ref, wo2_ref, bo2_ref, ln2_g_ref, ln2_b_ref,
    pool_w_ref, pool_b_ref, cls_w_ref, cls_b_ref,
    # outputs
    logits_ref,
    # scratch
    ctx_ref,
    *, num_layers, batch, seq, heads, head_dim, eps):
    hidden = heads * head_dim
    scale = 1.0 / math.sqrt(head_dim)

    def layernorm(x, g, b):
        mu = jnp.mean(x, axis=-1, keepdims=True)
        xc = x - mu
        var = jnp.mean(xc * xc, axis=-1, keepdims=True)
        return xc * lax.rsqrt(var + eps) * g + b

    def gelu(y):
        # exact (erf-based) GELU, as in HF BERT
        return 0.5 * y * (1.0 + lax.erf(y * (1.0 / math.sqrt(2.0))))

    # Embedding LayerNorm (no residual, no zeros tensor).
    x = layernorm(emb_ref[...], emb_ln_g_ref[...], emb_ln_b_ref[...])  # (B*S, H)

    # Additive attention-mask bias built in-kernel from the raw (B, S) mask.
    neg_bias = (1.0 - mask_ref[...]) * -1e9                            # (B, S)

    for l in range(num_layers):
        # ---- Self-attention: fused QKV projection, per-head softmax ----
        qkv = _mm(x, wqkv_ref[l]) + bqkv_ref[l]                        # (B*S, 3H)
        for b in range(batch):
            r0 = b * seq
            bias_b = neg_bias[b:b + 1, :]                              # (1, S)
            for h in range(heads):
                c0 = h * head_dim
                q = qkv[r0:r0 + seq, c0:c0 + head_dim]                 # (S, Dh)
                k = qkv[r0:r0 + seq, hidden + c0:hidden + c0 + head_dim]
                v = qkv[r0:r0 + seq, 2 * hidden + c0:2 * hidden + c0 + head_dim]
                s = _mm_t(q, k) * scale + bias_b                       # (S, S)
                s = s - jnp.max(s, axis=-1, keepdims=True)
                p = jnp.exp(s)
                p = p * pl.reciprocal(jnp.sum(p, axis=-1, keepdims=True),
                                      approx=True)
                ctx_ref[r0:r0 + seq, c0:c0 + head_dim] = _mm(p, v)
        attn_out = _mm(ctx_ref[...], wo_ref[l]) + bo_ref[l]
        x = layernorm(attn_out + x, ln1_g_ref[l], ln1_b_ref[l])

        # ---- Feed-forward ----
        h_act = gelu(_mm(x, wi_ref[l]) + bi_ref[l])                    # (B*S, I)
        ffn = _mm(h_act, wo2_ref[l]) + bo2_ref[l]                      # (B*S, H)
        x = layernorm(ffn + x, ln2_g_ref[l], ln2_b_ref[l])
        # NOTE: dropout layers are identity at inference time (eval mode).

    # ---- Pooler (tanh over [CLS]) + classifier ----
    for b in range(batch):
        cls_tok = x[b * seq:b * seq + 1, :]                            # (1, H)
        pooled = jnp.tanh(_mm(cls_tok, pool_w_ref[...]) + pool_b_ref[...])
        logits_ref[b:b + 1, :] = _mm(pooled, cls_w_ref[...]) + cls_b_ref[...]


# ----------------------------- parameters -----------------------------

def init_params(key, cfg):
    H, I, L = cfg["hidden"], cfg["intermediate"], cfg["layers"]
    n_labels = cfg["num_labels"]

    def nrm(k, shape):
        return 0.02 * jax.random.normal(k, shape, dtype=jnp.float32)

    ks = iter(jax.random.split(key, 16))
    return {
        "word_emb": nrm(next(ks), (cfg["vocab"], H)),
        "pos_emb": nrm(next(ks), (cfg["max_pos"], H)),
        "type_emb": nrm(next(ks), (cfg["type_vocab"], H)),
        "emb_ln_g": jnp.ones((1, H), jnp.float32),
        "emb_ln_b": jnp.zeros((1, H), jnp.float32),
        # Per-layer weights stacked on a leading layer axis; Wq/Wk/Wv fused.
        "wqkv": nrm(next(ks), (L, H, 3 * H)),
        "bqkv": jnp.zeros((L, 1, 3 * H), jnp.float32),
        "wo": nrm(next(ks), (L, H, H)),
        "bo": jnp.zeros((L, 1, H), jnp.float32),
        "ln1_g": jnp.ones((L, 1, H), jnp.float32),
        "ln1_b": jnp.zeros((L, 1, H), jnp.float32),
        "wi": nrm(next(ks), (L, H, I)),
        "bi": jnp.zeros((L, 1, I), jnp.float32),
        "wo2": nrm(next(ks), (L, I, H)),
        "bo2": jnp.zeros((L, 1, H), jnp.float32),
        "ln2_g": jnp.ones((L, 1, H), jnp.float32),
        "ln2_b": jnp.zeros((L, 1, H), jnp.float32),
        "pool_w": nrm(next(ks), (H, H)),
        "pool_b": jnp.zeros((1, H), jnp.float32),
        "cls_w": nrm(next(ks), (H, n_labels)),
        "cls_b": jnp.zeros((1, n_labels), jnp.float32),
    }


# ----------------------------- forward -----------------------------

def bert_classifier_forward(params, input_ids, attention_mask, token_type_ids,
                            cfg):
    """Equivalent of CustomBERTClassifier.forward(inputs) -> logits (B, num_labels)."""
    B, S = input_ids.shape
    H, nH, L = cfg["hidden"], cfg["heads"], cfg["layers"]
    Dh = H // nH
    n_labels = cfg["num_labels"]

    # Embedding table gathers stay in XLA (tiny, data-dependent gather);
    # everything downstream runs inside one fused Pallas kernel.
    emb = (params["word_emb"][input_ids]
           + params["pos_emb"][jnp.arange(S)][None, :, :]
           + params["type_emb"][token_type_ids])
    emb = emb.reshape(B * S, H).astype(jnp.float32)
    mask = attention_mask.astype(jnp.float32)

    bf16 = jnp.bfloat16
    kernel = functools.partial(
        _bert_fused_kernel, num_layers=L, batch=B, seq=S,
        heads=nH, head_dim=Dh, eps=1e-12)

    return pl.pallas_call(
        kernel,
        out_shape=jax.ShapeDtypeStruct((B, n_labels), jnp.float32),
        scratch_shapes=[pltpu.VMEM((B * S, H), jnp.float32)],
    )(
        emb, mask,
        params["emb_ln_g"], params["emb_ln_b"],
        params["wqkv"].astype(bf16), params["bqkv"],
        params["wo"].astype(bf16), params["bo"],
        params["ln1_g"], params["ln1_b"],
        params["wi"].astype(bf16), params["bi"],
        params["wo2"].astype(bf16), params["bo2"],
        params["ln2_g"], params["ln2_b"],
        params["pool_w"].astype(bf16), params["pool_b"],
        params["cls_w"].astype(bf16), params["cls_b"],
    )


# ----------------------------- main -----------------------------

if __name__ == "__main__":
    key = jax.random.PRNGKey(0)
    k_param, k_ids = jax.random.split(key)

    B, S = 2, 8
    params = init_params(k_param, CFG)

    input_ids = jax.random.randint(k_ids, (B, S), 0, CFG["vocab"],
                                   dtype=jnp.int32)
    attention_mask = jnp.ones((B, S), dtype=jnp.int32)
    token_type_ids = jnp.zeros((B, S), dtype=jnp.int32)

    fwd = jax.jit(functools.partial(bert_classifier_forward, cfg=CFG))
    logits = fwd(params, input_ids, attention_mask, token_type_ids)
    logits = jax.block_until_ready(logits)
    assert logits.shape == (B, CFG["num_labels"])
    print("KERNEL_OK")
</pallas_src>

<mosaic_0001>
module attributes {stable_mosaic.version = 11 : i64} {
  func.func @_bert_fused_kernel(%arg0: memref<16x32xf32, #tpu.memory_space<vmem>>, %arg1: memref<2x8xf32, #tpu.memory_space<vmem>>, %arg2: memref<1x32xf32, #tpu.memory_space<vmem>>, %arg3: memref<1x32xf32, #tpu.memory_space<vmem>>, %arg4: memref<2x32x96xbf16, #tpu.memory_space<vmem>>, %arg5: memref<2x1x96xf32, #tpu.memory_space<vmem>>, %arg6: memref<2x32x32xbf16, #tpu.memory_space<vmem>>, %arg7: memref<2x1x32xf32, #tpu.memory_space<vmem>>, %arg8: memref<2x1x32xf32, #tpu.memory_space<vmem>>, %arg9: memref<2x1x32xf32, #tpu.memory_space<vmem>>, %arg10: memref<2x32x64xbf16, #tpu.memory_space<vmem>>, %arg11: memref<2x1x64xf32, #tpu.memory_space<vmem>>, %arg12: memref<2x64x32xbf16, #tpu.memory_space<vmem>>, %arg13: memref<2x1x32xf32, #tpu.memory_space<vmem>>, %arg14: memref<2x1x32xf32, #tpu.memory_space<vmem>>, %arg15: memref<2x1x32xf32, #tpu.memory_space<vmem>>, %arg16: memref<32x32xbf16, #tpu.memory_space<vmem>>, %arg17: memref<1x32xf32, #tpu.memory_space<vmem>>, %arg18: memref<32x3xbf16, #tpu.memory_space<vmem>>, %arg19: memref<1x3xf32, #tpu.memory_space<vmem>>, %arg20: memref<2x3xf32, #tpu.memory_space<vmem>>, %arg21: memref<16x32xf32, #tpu.memory_space<vmem>>) attributes {dimension_semantics = [], scalar_prefetch = 0 : i64, scratch_operands = 1 : i64, tpu.core_type = #tpu.core_type<tc>} {
    %c0 = arith.constant 0 : index
    %c0_0 = arith.constant 0 : index
    %0 = vector.load %arg0[%c0, %c0_0] : memref<16x32xf32, #tpu.memory_space<vmem>>, vector<16x32xf32>
    %c0_1 = arith.constant 0 : index
    %c0_2 = arith.constant 0 : index
    %1 = vector.load %arg2[%c0_1, %c0_2] : memref<1x32xf32, #tpu.memory_space<vmem>>, vector<1x32xf32>
    %c0_3 = arith.constant 0 : index
    %c0_4 = arith.constant 0 : index
    %2 = vector.load %arg3[%c0_3, %c0_4] : memref<1x32xf32, #tpu.memory_space<vmem>>, vector<1x32xf32>
    %cst = arith.constant dense<0.000000e+00> : vector<16xf32>
    %3 = vector.multi_reduction <add>, %0, %cst [1] : vector<16x32xf32> to vector<16xf32>
    %4 = vector.shape_cast %3 : vector<16xf32> to vector<16x1xf32>
    %cst_5 = arith.constant 3.200000e+01 : f32
    %5 = vector.broadcast %cst_5 : f32 to vector<16x1xf32>
    %6 = arith.divf %4, %5 : vector<16x1xf32>
    %7 = vector.broadcast %6 : vector<16x1xf32> to vector<16x32xf32>
    %8 = arith.subf %0, %7 : vector<16x32xf32>
    %9 = arith.mulf %8, %8 : vector<16x32xf32>
    %cst_6 = arith.constant dense<0.000000e+00> : vector<16xf32>
    %10 = vector.multi_reduction <add>, %9, %cst_6 [1] : vector<16x32xf32> to vector<16xf32>
    %11 = vector.shape_cast %10 : vector<16xf32> to vector<16x1xf32>
    %cst_7 = arith.constant 3.200000e+01 : f32
    %12 = vector.broadcast %cst_7 : f32 to vector<16x1xf32>
    %13 = arith.divf %11, %12 : vector<16x1xf32>
    %cst_8 = arith.constant 9.99999996E-13 : f32
    %14 = vector.broadcast %cst_8 : f32 to vector<16x1xf32>
    %15 = arith.addf %13, %14 : vector<16x1xf32>
    %16 = math.rsqrt %15 : vector<16x1xf32>
    %17 = vector.broadcast %16 : vector<16x1xf32> to vector<16x32xf32>
    %18 = arith.mulf %8, %17 : vector<16x32xf32>
    %19 = vector.broadcast %1 : vector<1x32xf32> to vector<16x32xf32>
    %20 = arith.mulf %18, %19 : vector<16x32xf32>
    %21 = vector.broadcast %2 : vector<1x32xf32> to vector<16x32xf32>
    %22 = arith.addf %20, %21 : vector<16x32xf32>
    %c0_9 = arith.constant 0 : index
    %c0_10 = arith.constant 0 : index
    %23 = vector.load %arg1[%c0_9, %c0_10] : memref<2x8xf32, #tpu.memory_space<vmem>>, vector<2x8xf32>
    %cst_11 = arith.constant 1.000000e+00 : f32
    %24 = vector.broadcast %cst_11 : f32 to vector<2x8xf32>
    %25 = arith.subf %24, %23 : vector<2x8xf32>
    %cst_12 = arith.constant -1.000000e+09 : f32
    %26 = vector.broadcast %cst_12 : f32 to vector<2x8xf32>
    %27 = arith.mulf %25, %26 : vector<2x8xf32>
    %c0_13 = arith.constant 0 : index
    %c0_14 = arith.constant 0 : index
    %c0_15 = arith.constant 0 : index
    %28 = vector.load %arg4[%c0_13, %c0_14, %c0_15] : memref<2x32x96xbf16, #tpu.memory_space<vmem>>, vector<1x32x96xbf16>
    %29 = vector.shape_cast %28 : vector<1x32x96xbf16> to vector<32x96xbf16>
    %30 = arith.truncf %22 : vector<16x32xf32> to vector<16x32xbf16>
    %cst_16 = arith.constant dense<0.000000e+00> : vector<16x96xf32>
    %31 = tpu.matmul %30, %29, %cst_16 {dimension_numbers = #tpu.dot_dimension_numbers<[1], [0], [0], [1], [0, 0, 1, 1], [], []>} : vector<16x32xbf16>, vector<32x96xbf16>, vector<16x96xf32> -> vector<16x96xf32>
    %c0_17 = arith.constant 0 : index
    %c0_18 = arith.constant 0 : index
    %c0_19 = arith.constant 0 : index
    %32 = vector.load %arg5[%c0_17, %c0_18, %c0_19] : memref<2x1x96xf32, #tpu.memory_space<vmem>>, vector<1x1x96xf32>
    %33 = vector.shape_cast %32 : vector<1x1x96xf32> to vector<1x96xf32>
    %34 = vector.broadcast %33 : vector<1x96xf32> to vector<16x96xf32>
    %35 = arith.addf %31, %34 : vector<16x96xf32>
    %36 = vector.extract_strided_slice %27 {offsets = [0, 0], sizes = [1, 8], strides = [1, 1]} : vector<2x8xf32> to vector<1x8xf32>
    %37 = vector.extract_strided_slice %35 {offsets = [0, 0], sizes = [8, 16], strides = [1, 1]} : vector<16x96xf32> to vector<8x16xf32>
    %38 = vector.extract_strided_slice %35 {offsets = [0, 32], sizes = [8, 16], strides = [1, 1]} : vector<16x96xf32> to vector<8x16xf32>
    %39 = vector.extract_strided_slice %35 {offsets = [0, 64], sizes = [8, 16], strides = [1, 1]} : vector<16x96xf32> to vector<8x16xf32>
    %40 = arith.truncf %37 : vector<8x16xf32> to vector<8x16xbf16>
    %41 = arith.truncf %38 : vector<8x16xf32> to vector<8x16xbf16>
    %cst_20 = arith.constant dense<0.000000e+00> : vector<8x8xf32>
    %42 = tpu.matmul %40, %41, %cst_20 {dimension_numbers = #tpu.dot_dimension_numbers<[1], [1], [0], [0], [0, 0, 1, 0], [], []>} : vector<8x16xbf16>, vector<8x16xbf16>, vector<8x8xf32> -> vector<8x8xf32>
    %cst_21 = arith.constant 2.500000e-01 : f32
    %43 = vector.broadcast %cst_21 : f32 to vector<8x8xf32>
    %44 = arith.mulf %42, %43 : vector<8x8xf32>
    %45 = vector.broadcast %36 : vector<1x8xf32> to vector<8x8xf32>
    %46 = arith.addf %44, %45 : vector<8x8xf32>
    %cst_22 = arith.constant dense<0xFF800000> : vector<8xf32>
    %47 = vector.multi_reduction <maximumf>, %46, %cst_22 [1] : vector<8x8xf32> to vector<8xf32>
    %48 = vector.shape_cast %47 : vector<8xf32> to vector<8x1xf32>
    %49 = vector.broadcast %48 : vector<8x1xf32> to vector<8x8xf32>
    %50 = arith.subf %46, %49 : vector<8x8xf32>
    %51 = math.exp %50 : vector<8x8xf32>
    %cst_23 = arith.constant dense<0.000000e+00> : vector<8xf32>
    %52 = vector.multi_reduction <add>, %51, %cst_23 [1] : vector<8x8xf32> to vector<8xf32>
    %53 = vector.shape_cast %52 : vector<8xf32> to vector<8x1xf32>
    %54 = tpu.reciprocal %53 {approx = true} : vector<8x1xf32> -> vector<8x1xf32>
    %55 = vector.broadcast %54 : vector<8x1xf32> to vector<8x8xf32>
    %56 = arith.mulf %51, %55 : vector<8x8xf32>
    %57 = arith.truncf %56 : vector<8x8xf32> to vector<8x8xbf16>
    %58 = arith.truncf %39 : vector<8x16xf32> to vector<8x16xbf16>
    %cst_24 = arith.constant dense<0.000000e+00> : vector<8x16xf32>
    %59 = tpu.matmul %57, %58, %cst_24 {dimension_numbers = #tpu.dot_dimension_numbers<[1], [0], [0], [1], [0, 0, 1, 1], [], []>} : vector<8x8xbf16>, vector<8x16xbf16>, vector<8x16xf32> -> vector<8x16xf32>
    %c0_25 = arith.constant 0 : index
    %c0_26 = arith.constant 0 : index
    %60 = vector.load %arg21[%c0_25, %c0_26] : memref<16x32xf32, #tpu.memory_space<vmem>>, vector<8x16xf32>
    tpu.vector_store %arg21[%c0_25, %c0_26], %59 {strides = array<i32>} : memref<16x32xf32, #tpu.memory_space<vmem>>, vector<8x16xf32>,
    %61 = vector.extract_strided_slice %35 {offsets = [0, 16], sizes = [8, 16], strides = [1, 1]} : vector<16x96xf32> to vector<8x16xf32>
    %62 = vector.extract_strided_slice %35 {offsets = [0, 48], sizes = [8, 16], strides = [1, 1]} : vector<16x96xf32> to vector<8x16xf32>
    %63 = vector.extract_strided_slice %35 {offsets = [0, 80], sizes = [8, 16], strides = [1, 1]} : vector<16x96xf32> to vector<8x16xf32>
    %64 = arith.truncf %61 : vector<8x16xf32> to vector<8x16xbf16>
    %65 = arith.truncf %62 : vector<8x16xf32> to vector<8x16xbf16>
    %cst_27 = arith.constant dense<0.000000e+00> : vector<8x8xf32>
    %66 = tpu.matmul %64, %65, %cst_27 {dimension_numbers = #tpu.dot_dimension_numbers<[1], [1], [0], [0], [0, 0, 1, 0], [], []>} : vector<8x16xbf16>, vector<8x16xbf16>, vector<8x8xf32> -> vector<8x8xf32>
    %cst_28 = arith.constant 2.500000e-01 : f32
    %67 = vector.broadcast %cst_28 : f32 to vector<8x8xf32>
    %68 = arith.mulf %66, %67 : vector<8x8xf32>
    %69 = vector.broadcast %36 : vector<1x8xf32> to vector<8x8xf32>
    %70 = arith.addf %68, %69 : vector<8x8xf32>
    %cst_29 = arith.constant dense<0xFF800000> : vector<8xf32>
    %71 = vector.multi_reduction <maximumf>, %70, %cst_29 [1] : vector<8x8xf32> to vector<8xf32>
    %72 = vector.shape_cast %71 : vector<8xf32> to vector<8x1xf32>
    %73 = vector.broadcast %72 : vector<8x1xf32> to vector<8x8xf32>
    %74 = arith.subf %70, %73 : vector<8x8xf32>
    %75 = math.exp %74 : vector<8x8xf32>
    %cst_30 = arith.constant dense<0.000000e+00> : vector<8xf32>
    %76 = vector.multi_reduction <add>, %75, %cst_30 [1] : vector<8x8xf32> to vector<8xf32>
    %77 = vector.shape_cast %76 : vector<8xf32> to vector<8x1xf32>
    %78 = tpu.reciprocal %77 {approx = true} : vector<8x1xf32> -> vector<8x1xf32>
    %79 = vector.broadcast %78 : vector<8x1xf32> to vector<8x8xf32>
    %80 = arith.mulf %75, %79 : vector<8x8xf32>
    %81 = arith.truncf %80 : vector<8x8xf32> to vector<8x8xbf16>
    %82 = arith.truncf %63 : vector<8x16xf32> to vector<8x16xbf16>
    %cst_31 = arith.constant dense<0.000000e+00> : vector<8x16xf32>
    %83 = tpu.matmul %81, %82, %cst_31 {dimension_numbers = #tpu.dot_dimension_numbers<[1], [0], [0], [1], [0, 0, 1, 1], [], []>} : vector<8x8xbf16>, vector<8x16xbf16>, vector<8x16xf32> -> vector<8x16xf32>
    %c0_32 = arith.constant 0 : index
    %c16 = arith.constant 16 : index
    %84 = vector.load %arg21[%c0_32, %c16] : memref<16x32xf32, #tpu.memory_space<vmem>>, vector<8x16xf32>
    tpu.vector_store %arg21[%c0_32, %c16], %83 {strides = array<i32>} : memref<16x32xf32, #tpu.memory_space<vmem>>, vector<8x16xf32>,
    %85 = vector.extract_strided_slice %27 {offsets = [1, 0], sizes = [1, 8], strides = [1, 1]} : vector<2x8xf32> to vector<1x8xf32>
    %86 = vector.extract_strided_slice %35 {offsets = [8, 0], sizes = [8, 16], strides = [1, 1]} : vector<16x96xf32> to vector<8x16xf32>
    %87 = vector.extract_strided_slice %35 {offsets = [8, 32], sizes = [8, 16], strides = [1, 1]} : vector<16x96xf32> to vector<8x16xf32>
    %88 = vector.extract_strided_slice %35 {offsets = [8, 64], sizes = [8, 16], strides = [1, 1]} : vector<16x96xf32> to vector<8x16xf32>
    %89 = arith.truncf %86 : vector<8x16xf32> to vector<8x16xbf16>
    %90 = arith.truncf %87 : vector<8x16xf32> to vector<8x16xbf16>
    %cst_33 = arith.constant dense<0.000000e+00> : vector<8x8xf32>
    %91 = tpu.matmul %89, %90, %cst_33 {dimension_numbers = #tpu.dot_dimension_numbers<[1], [1], [0], [0], [0, 0, 1, 0], [], []>} : vector<8x16xbf16>, vector<8x16xbf16>, vector<8x8xf32> -> vector<8x8xf32>
    %cst_34 = arith.constant 2.500000e-01 : f32
    %92 = vector.broadcast %cst_34 : f32 to vector<8x8xf32>
    %93 = arith.mulf %91, %92 : vector<8x8xf32>
    %94 = vector.broadcast %85 : vector<1x8xf32> to vector<8x8xf32>
    %95 = arith.addf %93, %94 : vector<8x8xf32>
    %cst_35 = arith.constant dense<0xFF800000> : vector<8xf32>
    %96 = vector.multi_reduction <maximumf>, %95, %cst_35 [1] : vector<8x8xf32> to vector<8xf32>
    %97 = vector.shape_cast %96 : vector<8xf32> to vector<8x1xf32>
    %98 = vector.broadcast %97 : vector<8x1xf32> to vector<8x8xf32>
    %99 = arith.subf %95, %98 : vector<8x8xf32>
    %100 = math.exp %99 : vector<8x8xf32>
    %cst_36 = arith.constant dense<0.000000e+00> : vector<8xf32>
    %101 = vector.multi_reduction <add>, %100, %cst_36 [1] : vector<8x8xf32> to vector<8xf32>
    %102 = vector.shape_cast %101 : vector<8xf32> to vector<8x1xf32>
    %103 = tpu.reciprocal %102 {approx = true} : vector<8x1xf32> -> vector<8x1xf32>
    %104 = vector.broadcast %103 : vector<8x1xf32> to vector<8x8xf32>
    %105 = arith.mulf %100, %104 : vector<8x8xf32>
    %106 = arith.truncf %105 : vector<8x8xf32> to vector<8x8xbf16>
    %107 = arith.truncf %88 : vector<8x16xf32> to vector<8x16xbf16>
    %cst_37 = arith.constant dense<0.000000e+00> : vector<8x16xf32>
    %108 = tpu.matmul %106, %107, %cst_37 {dimension_numbers = #tpu.dot_dimension_numbers<[1], [0], [0], [1], [0, 0, 1, 1], [], []>} : vector<8x8xbf16>, vector<8x16xbf16>, vector<8x16xf32> -> vector<8x16xf32>
    %c8 = arith.constant 8 : index
    %c0_38 = arith.constant 0 : index
    %109 = vector.load %arg21[%c8, %c0_38] : memref<16x32xf32, #tpu.memory_space<vmem>>, vector<8x16xf32>
    tpu.vector_store %arg21[%c8, %c0_38], %108 {strides = array<i32>} : memref<16x32xf32, #tpu.memory_space<vmem>>, vector<8x16xf32>,
    %110 = vector.extract_strided_slice %35 {offsets = [8, 16], sizes = [8, 16], strides = [1, 1]} : vector<16x96xf32> to vector<8x16xf32>
    %111 = vector.extract_strided_slice %35 {offsets = [8, 48], sizes = [8, 16], strides = [1, 1]} : vector<16x96xf32> to vector<8x16xf32>
    %112 = vector.extract_strided_slice %35 {offsets = [8, 80], sizes = [8, 16], strides = [1, 1]} : vector<16x96xf32> to vector<8x16xf32>
    %113 = arith.truncf %110 : vector<8x16xf32> to vector<8x16xbf16>
    %114 = arith.truncf %111 : vector<8x16xf32> to vector<8x16xbf16>
    %cst_39 = arith.constant dense<0.000000e+00> : vector<8x8xf32>
    %115 = tpu.matmul %113, %114, %cst_39 {dimension_numbers = #tpu.dot_dimension_numbers<[1], [1], [0], [0], [0, 0, 1, 0], [], []>} : vector<8x16xbf16>, vector<8x16xbf16>, vector<8x8xf32> -> vector<8x8xf32>
    %cst_40 = arith.constant 2.500000e-01 : f32
    %116 = vector.broadcast %cst_40 : f32 to vector<8x8xf32>
    %117 = arith.mulf %115, %116 : vector<8x8xf32>
    %118 = vector.broadcast %85 : vector<1x8xf32> to vector<8x8xf32>
    %119 = arith.addf %117, %118 : vector<8x8xf32>
    %cst_41 = arith.constant dense<0xFF800000> : vector<8xf32>
    %120 = vector.multi_reduction <maximumf>, %119, %cst_41 [1] : vector<8x8xf32> to vector<8xf32>
    %121 = vector.shape_cast %120 : vector<8xf32> to vector<8x1xf32>
    %122 = vector.broadcast %121 : vector<8x1xf32> to vector<8x8xf32>
    %123 = arith.subf %119, %122 : vector<8x8xf32>
    %124 = math.exp %123 : vector<8x8xf32>
    %cst_42 = arith.constant dense<0.000000e+00> : vector<8xf32>
    %125 = vector.multi_reduction <add>, %124, %cst_42 [1] : vector<8x8xf32> to vector<8xf32>
    %126 = vector.shape_cast %125 : vector<8xf32> to vector<8x1xf32>
    %127 = tpu.reciprocal %126 {approx = true} : vector<8x1xf32> -> vector<8x1xf32>
    %128 = vector.broadcast %127 : vector<8x1xf32> to vector<8x8xf32>
    %129 = arith.mulf %124, %128 : vector<8x8xf32>
    %130 = arith.truncf %129 : vector<8x8xf32> to vector<8x8xbf16>
    %131 = arith.truncf %112 : vector<8x16xf32> to vector<8x16xbf16>
    %cst_43 = arith.constant dense<0.000000e+00> : vector<8x16xf32>
    %132 = tpu.matmul %130, %131, %cst_43 {dimension_numbers = #tpu.dot_dimension_numbers<[1], [0], [0], [1], [0, 0, 1, 1], [], []>} : vector<8x8xbf16>, vector<8x16xbf16>, vector<8x16xf32> -> vector<8x16xf32>
    %c8_44 = arith.constant 8 : index
    %c16_45 = arith.constant 16 : index
    %133 = vector.load %arg21[%c8_44, %c16_45] : memref<16x32xf32, #tpu.memory_space<vmem>>, vector<8x16xf32>
    tpu.vector_store %arg21[%c8_44, %c16_45], %132 {strides = array<i32>} : memref<16x32xf32, #tpu.memory_space<vmem>>, vector<8x16xf32>,
    %c0_46 = arith.constant 0 : index
    %c0_47 = arith.constant 0 : index
    %134 = vector.load %arg21[%c0_46, %c0_47] : memref<16x32xf32, #tpu.memory_space<vmem>>, vector<16x32xf32>
    %c0_48 = arith.constant 0 : index
    %c0_49 = arith.constant 0 : index
    %c0_50 = arith.constant 0 : index
    %135 = vector.load %arg6[%c0_48, %c0_49, %c0_50] : memref<2x32x32xbf16, #tpu.memory_space<vmem>>, vector<1x32x32xbf16>
    %136 = vector.shape_cast %135 : vector<1x32x32xbf16> to vector<32x32xbf16>
    %137 = arith.truncf %134 : vector<16x32xf32> to vector<16x32xbf16>
    %cst_51 = arith.constant dense<0.000000e+00> : vector<16x32xf32>
    %138 = tpu.matmul %137, %136, %cst_51 {dimension_numbers = #tpu.dot_dimension_numbers<[1], [0], [0], [1], [0, 0, 1, 1], [], []>} : vector<16x32xbf16>, vector<32x32xbf16>, vector<16x32xf32> -> vector<16x32xf32>
    %c0_52 = arith.constant 0 : index
    %c0_53 = arith.constant 0 : index
    %c0_54 = arith.constant 0 : index
    %139 = vector.load %arg7[%c0_52, %c0_53, %c0_54] : memref<2x1x32xf32, #tpu.memory_space<vmem>>, vector<1x1x32xf32>
    %140 = vector.shape_cast %139 : vector<1x1x32xf32> to vector<1x32xf32>
    %141 = vector.broadcast %140 : vector<1x32xf32> to vector<16x32xf32>
    %142 = arith.addf %138, %141 : vector<16x32xf32>
    %143 = arith.addf %142, %22 : vector<16x32xf32>
    %c0_55 = arith.constant 0 : index
    %c0_56 = arith.constant 0 : index
    %c0_57 = arith.constant 0 : index
    %144 = vector.load %arg8[%c0_55, %c0_56, %c0_57] : memref<2x1x32xf32, #tpu.memory_space<vmem>>, vector<1x1x32xf32>
    %145 = vector.shape_cast %144 : vector<1x1x32xf32> to vector<1x32xf32>
    %c0_58 = arith.constant 0 : index
    %c0_59 = arith.constant 0 : index
    %c0_60 = arith.constant 0 : index
    %146 = vector.load %arg9[%c0_58, %c0_59, %c0_60] : memref<2x1x32xf32, #tpu.memory_space<vmem>>, vector<1x1x32xf32>
    %147 = vector.shape_cast %146 : vector<1x1x32xf32> to vector<1x32xf32>
    %cst_61 = arith.constant dense<0.000000e+00> : vector<16xf32>
    %148 = vector.multi_reduction <add>, %143, %cst_61 [1] : vector<16x32xf32> to vector<16xf32>
    %149 = vector.shape_cast %148 : vector<16xf32> to vector<16x1xf32>
    %cst_62 = arith.constant 3.200000e+01 : f32
    %150 = vector.broadcast %cst_62 : f32 to vector<16x1xf32>
    %151 = arith.divf %149, %150 : vector<16x1xf32>
    %152 = vector.broadcast %151 : vector<16x1xf32> to vector<16x32xf32>
    %153 = arith.subf %143, %152 : vector<16x32xf32>
    %154 = arith.mulf %153, %153 : vector<16x32xf32>
    %cst_63 = arith.constant dense<0.000000e+00> : vector<16xf32>
    %155 = vector.multi_reduction <add>, %154, %cst_63 [1] : vector<16x32xf32> to vector<16xf32>
    %156 = vector.shape_cast %155 : vector<16xf32> to vector<16x1xf32>
    %cst_64 = arith.constant 3.200000e+01 : f32
    %157 = vector.broadcast %cst_64 : f32 to vector<16x1xf32>
    %158 = arith.divf %156, %157 : vector<16x1xf32>
    %cst_65 = arith.constant 9.99999996E-13 : f32
    %159 = vector.broadcast %cst_65 : f32 to vector<16x1xf32>
    %160 = arith.addf %158, %159 : vector<16x1xf32>
    %161 = math.rsqrt %160 : vector<16x1xf32>
    %162 = vector.broadcast %161 : vector<16x1xf32> to vector<16x32xf32>
    %163 = arith.mulf %153, %162 : vector<16x32xf32>
    %164 = vector.broadcast %145 : vector<1x32xf32> to vector<16x32xf32>
    %165 = arith.mulf %163, %164 : vector<16x32xf32>
    %166 = vector.broadcast %147 : vector<1x32xf32> to vector<16x32xf32>
    %167 = arith.addf %165, %166 : vector<16x32xf32>
    %c0_66 = arith.constant 0 : index
    %c0_67 = arith.constant 0 : index
    %c0_68 = arith.constant 0 : index
    %168 = vector.load %arg10[%c0_66, %c0_67, %c0_68] : memref<2x32x64xbf16, #tpu.memory_space<vmem>>, vector<1x32x64xbf16>
    %169 = vector.shape_cast %168 : vector<1x32x64xbf16> to vector<32x64xbf16>
    %170 = arith.truncf %167 : vector<16x32xf32> to vector<16x32xbf16>
    %cst_69 = arith.constant dense<0.000000e+00> : vector<16x64xf32>
    %171 = tpu.matmul %170, %169, %cst_69 {dimension_numbers = #tpu.dot_dimension_numbers<[1], [0], [0], [1], [0, 0, 1, 1], [], []>} : vector<16x32xbf16>, vector<32x64xbf16>, vector<16x64xf32> -> vector<16x64xf32>
    %c0_70 = arith.constant 0 : index
    %c0_71 = arith.constant 0 : index
    %c0_72 = arith.constant 0 : index
    %172 = vector.load %arg11[%c0_70, %c0_71, %c0_72] : memref<2x1x64xf32, #tpu.memory_space<vmem>>, vector<1x1x64xf32>
    %173 = vector.shape_cast %172 : vector<1x1x64xf32> to vector<1x64xf32>
    %174 = vector.broadcast %173 : vector<1x64xf32> to vector<16x64xf32>
    %175 = arith.addf %171, %174 : vector<16x64xf32>
    %cst_73 = arith.constant 5.000000e-01 : f32
    %176 = vector.broadcast %cst_73 : f32 to vector<16x64xf32>
    %177 = arith.mulf %176, %175 : vector<16x64xf32>
    %cst_74 = arith.constant 0.707106769 : f32
    %178 = vector.broadcast %cst_74 : f32 to vector<16x64xf32>
    %179 = arith.mulf %175, %178 : vector<16x64xf32>
    %180 = math.erf %179 : vector<16x64xf32>
    %cst_75 = arith.constant 1.000000e+00 : f32
    %181 = vector.broadcast %cst_75 : f32 to vector<16x64xf32>
    %182 = arith.addf %181, %180 : vector<16x64xf32>
    %183 = arith.mulf %177, %182 : vector<16x64xf32>
    %c0_76 = arith.constant 0 : index
    %c0_77 = arith.constant 0 : index
    %c0_78 = arith.constant 0 : index
    %184 = vector.load %arg12[%c0_76, %c0_77, %c0_78] : memref<2x64x32xbf16, #tpu.memory_space<vmem>>, vector<1x64x32xbf16>
    %185 = vector.shape_cast %184 : vector<1x64x32xbf16> to vector<64x32xbf16>
    %186 = arith.truncf %183 : vector<16x64xf32> to vector<16x64xbf16>
    %cst_79 = arith.constant dense<0.000000e+00> : vector<16x32xf32>
    %187 = tpu.matmul %186, %185, %cst_79 {dimension_numbers = #tpu.dot_dimension_numbers<[1], [0], [0], [1], [0, 0, 1, 1], [], []>} : vector<16x64xbf16>, vector<64x32xbf16>, vector<16x32xf32> -> vector<16x32xf32>
    %c0_80 = arith.constant 0 : index
    %c0_81 = arith.constant 0 : index
    %c0_82 = arith.constant 0 : index
    %188 = vector.load %arg13[%c0_80, %c0_81, %c0_82] : memref<2x1x32xf32, #tpu.memory_space<vmem>>, vector<1x1x32xf32>
    %189 = vector.shape_cast %188 : vector<1x1x32xf32> to vector<1x32xf32>
    %190 = vector.broadcast %189 : vector<1x32xf32> to vector<16x32xf32>
    %191 = arith.addf %187, %190 : vector<16x32xf32>
    %192 = arith.addf %191, %167 : vector<16x32xf32>
    %c0_83 = arith.constant 0 : index
    %c0_84 = arith.constant 0 : index
    %c0_85 = arith.constant 0 : index
    %193 = vector.load %arg14[%c0_83, %c0_84, %c0_85] : memref<2x1x32xf32, #tpu.memory_space<vmem>>, vector<1x1x32xf32>
    %194 = vector.shape_cast %193 : vector<1x1x32xf32> to vector<1x32xf32>
    %c0_86 = arith.constant 0 : index
    %c0_87 = arith.constant 0 : index
    %c0_88 = arith.constant 0 : index
    %195 = vector.load %arg15[%c0_86, %c0_87, %c0_88] : memref<2x1x32xf32, #tpu.memory_space<vmem>>, vector<1x1x32xf32>
    %196 = vector.shape_cast %195 : vector<1x1x32xf32> to vector<1x32xf32>
    %cst_89 = arith.constant dense<0.000000e+00> : vector<16xf32>
    %197 = vector.multi_reduction <add>, %192, %cst_89 [1] : vector<16x32xf32> to vector<16xf32>
    %198 = vector.shape_cast %197 : vector<16xf32> to vector<16x1xf32>
    %cst_90 = arith.constant 3.200000e+01 : f32
    %199 = vector.broadcast %cst_90 : f32 to vector<16x1xf32>
    %200 = arith.divf %198, %199 : vector<16x1xf32>
    %201 = vector.broadcast %200 : vector<16x1xf32> to vector<16x32xf32>
    %202 = arith.subf %192, %201 : vector<16x32xf32>
    %203 = arith.mulf %202, %202 : vector<16x32xf32>
    %cst_91 = arith.constant dense<0.000000e+00> : vector<16xf32>
    %204 = vector.multi_reduction <add>, %203, %cst_91 [1] : vector<16x32xf32> to vector<16xf32>
    %205 = vector.shape_cast %204 : vector<16xf32> to vector<16x1xf32>
    %cst_92 = arith.constant 3.200000e+01 : f32
    %206 = vector.broadcast %cst_92 : f32 to vector<16x1xf32>
    %207 = arith.divf %205, %206 : vector<16x1xf32>
    %cst_93 = arith.constant 9.99999996E-13 : f32
    %208 = vector.broadcast %cst_93 : f32 to vector<16x1xf32>
    %209 = arith.addf %207, %208 : vector<16x1xf32>
    %210 = math.rsqrt %209 : vector<16x1xf32>
    %211 = vector.broadcast %210 : vector<16x1xf32> to vector<16x32xf32>
    %212 = arith.mulf %202, %211 : vector<16x32xf32>
    %213 = vector.broadcast %194 : vector<1x32xf32> to vector<16x32xf32>
    %214 = arith.mulf %212, %213 : vector<16x32xf32>
    %215 = vector.broadcast %196 : vector<1x32xf32> to vector<16x32xf32>
    %216 = arith.addf %214, %215 : vector<16x32xf32>
    %c1 = arith.constant 1 : index
    %c0_94 = arith.constant 0 : index
    %c0_95 = arith.constant 0 : index
    %217 = vector.load %arg4[%c1, %c0_94, %c0_95] : memref<2x32x96xbf16, #tpu.memory_space<vmem>>, vector<1x32x96xbf16>
    %218 = vector.shape_cast %217 : vector<1x32x96xbf16> to vector<32x96xbf16>
    %219 = arith.truncf %216 : vector<16x32xf32> to vector<16x32xbf16>
    %cst_96 = arith.constant dense<0.000000e+00> : vector<16x96xf32>
    %220 = tpu.matmul %219, %218, %cst_96 {dimension_numbers = #tpu.dot_dimension_numbers<[1], [0], [0], [1], [0, 0, 1, 1], [], []>} : vector<16x32xbf16>, vector<32x96xbf16>, vector<16x96xf32> -> vector<16x96xf32>
    %c1_97 = arith.constant 1 : index
    %c0_98 = arith.constant 0 : index
    %c0_99 = arith.constant 0 : index
    %221 = vector.load %arg5[%c1_97, %c0_98, %c0_99] : memref<2x1x96xf32, #tpu.memory_space<vmem>>, vector<1x1x96xf32>
    %222 = vector.shape_cast %221 : vector<1x1x96xf32> to vector<1x96xf32>
    %223 = vector.broadcast %222 : vector<1x96xf32> to vector<16x96xf32>
    %224 = arith.addf %220, %223 : vector<16x96xf32>
    %225 = vector.extract_strided_slice %27 {offsets = [0, 0], sizes = [1, 8], strides = [1, 1]} : vector<2x8xf32> to vector<1x8xf32>
    %226 = vector.extract_strided_slice %224 {offsets = [0, 0], sizes = [8, 16], strides = [1, 1]} : vector<16x96xf32> to vector<8x16xf32>
    %227 = vector.extract_strided_slice %224 {offsets = [0, 32], sizes = [8, 16], strides = [1, 1]} : vector<16x96xf32> to vector<8x16xf32>
    %228 = vector.extract_strided_slice %224 {offsets = [0, 64], sizes = [8, 16], strides = [1, 1]} : vector<16x96xf32> to vector<8x16xf32>
    %229 = arith.truncf %226 : vector<8x16xf32> to vector<8x16xbf16>
    %230 = arith.truncf %227 : vector<8x16xf32> to vector<8x16xbf16>
    %cst_100 = arith.constant dense<0.000000e+00> : vector<8x8xf32>
    %231 = tpu.matmul %229, %230, %cst_100 {dimension_numbers = #tpu.dot_dimension_numbers<[1], [1], [0], [0], [0, 0, 1, 0], [], []>} : vector<8x16xbf16>, vector<8x16xbf16>, vector<8x8xf32> -> vector<8x8xf32>
    %cst_101 = arith.constant 2.500000e-01 : f32
    %232 = vector.broadcast %cst_101 : f32 to vector<8x8xf32>
    %233 = arith.mulf %231, %232 : vector<8x8xf32>
    %234 = vector.broadcast %225 : vector<1x8xf32> to vector<8x8xf32>
    %235 = arith.addf %233, %234 : vector<8x8xf32>
    %cst_102 = arith.constant dense<0xFF800000> : vector<8xf32>
    %236 = vector.multi_reduction <maximumf>, %235, %cst_102 [1] : vector<8x8xf32> to vector<8xf32>
    %237 = vector.shape_cast %236 : vector<8xf32> to vector<8x1xf32>
    %238 = vector.broadcast %237 : vector<8x1xf32> to vector<8x8xf32>
    %239 = arith.subf %235, %238 : vector<8x8xf32>
    %240 = math.exp %239 : vector<8x8xf32>
    %cst_103 = arith.constant dense<0.000000e+00> : vector<8xf32>
    %241 = vector.multi_reduction <add>, %240, %cst_103 [1] : vector<8x8xf32> to vector<8xf32>
    %242 = vector.shape_cast %241 : vector<8xf32> to vector<8x1xf32>
    %243 = tpu.reciprocal %242 {approx = true} : vector<8x1xf32> -> vector<8x1xf32>
    %244 = vector.broadcast %243 : vector<8x1xf32> to vector<8x8xf32>
    %245 = arith.mulf %240, %244 : vector<8x8xf32>
    %246 = arith.truncf %245 : vector<8x8xf32> to vector<8x8xbf16>
    %247 = arith.truncf %228 : vector<8x16xf32> to vector<8x16xbf16>
    %cst_104 = arith.constant dense<0.000000e+00> : vector<8x16xf32>
    %248 = tpu.matmul %246, %247, %cst_104 {dimension_numbers = #tpu.dot_dimension_numbers<[1], [0], [0], [1], [0, 0, 1, 1], [], []>} : vector<8x8xbf16>, vector<8x16xbf16>, vector<8x16xf32> -> vector<8x16xf32>
    %c0_105 = arith.constant 0 : index
    %c0_106 = arith.constant 0 : index
    %249 = vector.load %arg21[%c0_105, %c0_106] : memref<16x32xf32, #tpu.memory_space<vmem>>, vector<8x16xf32>
    tpu.vector_store %arg21[%c0_105, %c0_106], %248 {strides = array<i32>} : memref<16x32xf32, #tpu.memory_space<vmem>>, vector<8x16xf32>,
    %250 = vector.extract_strided_slice %224 {offsets = [0, 16], sizes = [8, 16], strides = [1, 1]} : vector<16x96xf32> to vector<8x16xf32>
    %251 = vector.extract_strided_slice %224 {offsets = [0, 48], sizes = [8, 16], strides = [1, 1]} : vector<16x96xf32> to vector<8x16xf32>
    %252 = vector.extract_strided_slice %224 {offsets = [0, 80], sizes = [8, 16], strides = [1, 1]} : vector<16x96xf32> to vector<8x16xf32>
    %253 = arith.truncf %250 : vector<8x16xf32> to vector<8x16xbf16>
    %254 = arith.truncf %251 : vector<8x16xf32> to vector<8x16xbf16>
    %cst_107 = arith.constant dense<0.000000e+00> : vector<8x8xf32>
    %255 = tpu.matmul %253, %254, %cst_107 {dimension_numbers = #tpu.dot_dimension_numbers<[1], [1], [0], [0], [0, 0, 1, 0], [], []>} : vector<8x16xbf16>, vector<8x16xbf16>, vector<8x8xf32> -> vector<8x8xf32>
    %cst_108 = arith.constant 2.500000e-01 : f32
    %256 = vector.broadcast %cst_108 : f32 to vector<8x8xf32>
    %257 = arith.mulf %255, %256 : vector<8x8xf32>
    %258 = vector.broadcast %225 : vector<1x8xf32> to vector<8x8xf32>
    %259 = arith.addf %257, %258 : vector<8x8xf32>
    %cst_109 = arith.constant dense<0xFF800000> : vector<8xf32>
    %260 = vector.multi_reduction <maximumf>, %259, %cst_109 [1] : vector<8x8xf32> to vector<8xf32>
    %261 = vector.shape_cast %260 : vector<8xf32> to vector<8x1xf32>
    %262 = vector.broadcast %261 : vector<8x1xf32> to vector<8x8xf32>
    %263 = arith.subf %259, %262 : vector<8x8xf32>
    %264 = math.exp %263 : vector<8x8xf32>
    %cst_110 = arith.constant dense<0.000000e+00> : vector<8xf32>
    %265 = vector.multi_reduction <add>, %264, %cst_110 [1] : vector<8x8xf32> to vector<8xf32>
    %266 = vector.shape_cast %265 : vector<8xf32> to vector<8x1xf32>
    %267 = tpu.reciprocal %266 {approx = true} : vector<8x1xf32> -> vector<8x1xf32>
    %268 = vector.broadcast %267 : vector<8x1xf32> to vector<8x8xf32>
    %269 = arith.mulf %264, %268 : vector<8x8xf32>
    %270 = arith.truncf %269 : vector<8x8xf32> to vector<8x8xbf16>
    %271 = arith.truncf %252 : vector<8x16xf32> to vector<8x16xbf16>
    %cst_111 = arith.constant dense<0.000000e+00> : vector<8x16xf32>
    %272 = tpu.matmul %270, %271, %cst_111 {dimension_numbers = #tpu.dot_dimension_numbers<[1], [0], [0], [1], [0, 0, 1, 1], [], []>} : vector<8x8xbf16>, vector<8x16xbf16>, vector<8x16xf32> -> vector<8x16xf32>
    %c0_112 = arith.constant 0 : index
    %c16_113 = arith.constant 16 : index
    %273 = vector.load %arg21[%c0_112, %c16_113] : memref<16x32xf32, #tpu.memory_space<vmem>>, vector<8x16xf32>
    tpu.vector_store %arg21[%c0_112, %c16_113], %272 {strides = array<i32>} : memref<16x32xf32, #tpu.memory_space<vmem>>, vector<8x16xf32>,
    %274 = vector.extract_strided_slice %27 {offsets = [1, 0], sizes = [1, 8], strides = [1, 1]} : vector<2x8xf32> to vector<1x8xf32>
    %275 = vector.extract_strided_slice %224 {offsets = [8, 0], sizes = [8, 16], strides = [1, 1]} : vector<16x96xf32> to vector<8x16xf32>
    %276 = vector.extract_strided_slice %224 {offsets = [8, 32], sizes = [8, 16], strides = [1, 1]} : vector<16x96xf32> to vector<8x16xf32>
    %277 = vector.extract_strided_slice %224 {offsets = [8, 64], sizes = [8, 16], strides = [1, 1]} : vector<16x96xf32> to vector<8x16xf32>
    %278 = arith.truncf %275 : vector<8x16xf32> to vector<8x16xbf16>
    %279 = arith.truncf %276 : vector<8x16xf32> to vector<8x16xbf16>
    %cst_114 = arith.constant dense<0.000000e+00> : vector<8x8xf32>
    %280 = tpu.matmul %278, %279, %cst_114 {dimension_numbers = #tpu.dot_dimension_numbers<[1], [1], [0], [0], [0, 0, 1, 0], [], []>} : vector<8x16xbf16>, vector<8x16xbf16>, vector<8x8xf32> -> vector<8x8xf32>
    %cst_115 = arith.constant 2.500000e-01 : f32
    %281 = vector.broadcast %cst_115 : f32 to vector<8x8xf32>
    %282 = arith.mulf %280, %281 : vector<8x8xf32>
    %283 = vector.broadcast %274 : vector<1x8xf32> to vector<8x8xf32>
    %284 = arith.addf %282, %283 : vector<8x8xf32>
    %cst_116 = arith.constant dense<0xFF800000> : vector<8xf32>
    %285 = vector.multi_reduction <maximumf>, %284, %cst_116 [1] : vector<8x8xf32> to vector<8xf32>
    %286 = vector.shape_cast %285 : vector<8xf32> to vector<8x1xf32>
    %287 = vector.broadcast %286 : vector<8x1xf32> to vector<8x8xf32>
    %288 = arith.subf %284, %287 : vector<8x8xf32>
    %289 = math.exp %288 : vector<8x8xf32>
    %cst_117 = arith.constant dense<0.000000e+00> : vector<8xf32>
    %290 = vector.multi_reduction <add>, %289, %cst_117 [1] : vector<8x8xf32> to vector<8xf32>
    %291 = vector.shape_cast %290 : vector<8xf32> to vector<8x1xf32>
    %292 = tpu.reciprocal %291 {approx = true} : vector<8x1xf32> -> vector<8x1xf32>
    %293 = vector.broadcast %292 : vector<8x1xf32> to vector<8x8xf32>
    %294 = arith.mulf %289, %293 : vector<8x8xf32>
    %295 = arith.truncf %294 : vector<8x8xf32> to vector<8x8xbf16>
    %296 = arith.truncf %277 : vector<8x16xf32> to vector<8x16xbf16>
    %cst_118 = arith.constant dense<0.000000e+00> : vector<8x16xf32>
    %297 = tpu.matmul %295, %296, %cst_118 {dimension_numbers = #tpu.dot_dimension_numbers<[1], [0], [0], [1], [0, 0, 1, 1], [], []>} : vector<8x8xbf16>, vector<8x16xbf16>, vector<8x16xf32> -> vector<8x16xf32>
    %c8_119 = arith.constant 8 : index
    %c0_120 = arith.constant 0 : index
    %298 = vector.load %arg21[%c8_119, %c0_120] : memref<16x32xf32, #tpu.memory_space<vmem>>, vector<8x16xf32>
    tpu.vector_store %arg21[%c8_119, %c0_120], %297 {strides = array<i32>} : memref<16x32xf32, #tpu.memory_space<vmem>>, vector<8x16xf32>,
    %299 = vector.extract_strided_slice %224 {offsets = [8, 16], sizes = [8, 16], strides = [1, 1]} : vector<16x96xf32> to vector<8x16xf32>
    %300 = vector.extract_strided_slice %224 {offsets = [8, 48], sizes = [8, 16], strides = [1, 1]} : vector<16x96xf32> to vector<8x16xf32>
    %301 = vector.extract_strided_slice %224 {offsets = [8, 80], sizes = [8, 16], strides = [1, 1]} : vector<16x96xf32> to vector<8x16xf32>
    %302 = arith.truncf %299 : vector<8x16xf32> to vector<8x16xbf16>
    %303 = arith.truncf %300 : vector<8x16xf32> to vector<8x16xbf16>
    %cst_121 = arith.constant dense<0.000000e+00> : vector<8x8xf32>
    %304 = tpu.matmul %302, %303, %cst_121 {dimension_numbers = #tpu.dot_dimension_numbers<[1], [1], [0], [0], [0, 0, 1, 0], [], []>} : vector<8x16xbf16>, vector<8x16xbf16>, vector<8x8xf32> -> vector<8x8xf32>
    %cst_122 = arith.constant 2.500000e-01 : f32
    %305 = vector.broadcast %cst_122 : f32 to vector<8x8xf32>
    %306 = arith.mulf %304, %305 : vector<8x8xf32>
    %307 = vector.broadcast %274 : vector<1x8xf32> to vector<8x8xf32>
    %308 = arith.addf %306, %307 : vector<8x8xf32>
    %cst_123 = arith.constant dense<0xFF800000> : vector<8xf32>
    %309 = vector.multi_reduction <maximumf>, %308, %cst_123 [1] : vector<8x8xf32> to vector<8xf32>
    %310 = vector.shape_cast %309 : vector<8xf32> to vector<8x1xf32>
    %311 = vector.broadcast %310 : vector<8x1xf32> to vector<8x8xf32>
    %312 = arith.subf %308, %311 : vector<8x8xf32>
    %313 = math.exp %312 : vector<8x8xf32>
    %cst_124 = arith.constant dense<0.000000e+00> : vector<8xf32>
    %314 = vector.multi_reduction <add>, %313, %cst_124 [1] : vector<8x8xf32> to vector<8xf32>
    %315 = vector.shape_cast %314 : vector<8xf32> to vector<8x1xf32>
    %316 = tpu.reciprocal %315 {approx = true} : vector<8x1xf32> -> vector<8x1xf32>
    %317 = vector.broadcast %316 : vector<8x1xf32> to vector<8x8xf32>
    %318 = arith.mulf %313, %317 : vector<8x8xf32>
    %319 = arith.truncf %318 : vector<8x8xf32> to vector<8x8xbf16>
    %320 = arith.truncf %301 : vector<8x16xf32> to vector<8x16xbf16>
    %cst_125 = arith.constant dense<0.000000e+00> : vector<8x16xf32>
    %321 = tpu.matmul %319, %320, %cst_125 {dimension_numbers = #tpu.dot_dimension_numbers<[1], [0], [0], [1], [0, 0, 1, 1], [], []>} : vector<8x8xbf16>, vector<8x16xbf16>, vector<8x16xf32> -> vector<8x16xf32>
    %c8_126 = arith.constant 8 : index
    %c16_127 = arith.constant 16 : index
    %322 = vector.load %arg21[%c8_126, %c16_127] : memref<16x32xf32, #tpu.memory_space<vmem>>, vector<8x16xf32>
    tpu.vector_store %arg21[%c8_126, %c16_127], %321 {strides = array<i32>} : memref<16x32xf32, #tpu.memory_space<vmem>>, vector<8x16xf32>,
    %c0_128 = arith.constant 0 : index
    %c0_129 = arith.constant 0 : index
    %323 = vector.load %arg21[%c0_128, %c0_129] : memref<16x32xf32, #tpu.memory_space<vmem>>, vector<16x32xf32>
    %c1_130 = arith.constant 1 : index
    %c0_131 = arith.constant 0 : index
    %c0_132 = arith.constant 0 : index
    %324 = vector.load %arg6[%c1_130, %c0_131, %c0_132] : memref<2x32x32xbf16, #tpu.memory_space<vmem>>, vector<1x32x32xbf16>
    %325 = vector.shape_cast %324 : vector<1x32x32xbf16> to vector<32x32xbf16>
    %326 = arith.truncf %323 : vector<16x32xf32> to vector<16x32xbf16>
    %cst_133 = arith.constant dense<0.000000e+00> : vector<16x32xf32>
    %327 = tpu.matmul %326, %325, %cst_133 {dimension_numbers = #tpu.dot_dimension_numbers<[1], [0], [0], [1], [0, 0, 1, 1], [], []>} : vector<16x32xbf16>, vector<32x32xbf16>, vector<16x32xf32> -> vector<16x32xf32>
    %c1_134 = arith.constant 1 : index
    %c0_135 = arith.constant 0 : index
    %c0_136 = arith.constant 0 : index
    %328 = vector.load %arg7[%c1_134, %c0_135, %c0_136] : memref<2x1x32xf32, #tpu.memory_space<vmem>>, vector<1x1x32xf32>
    %329 = vector.shape_cast %328 : vector<1x1x32xf32> to vector<1x32xf32>
    %330 = vector.broadcast %329 : vector<1x32xf32> to vector<16x32xf32>
    %331 = arith.addf %327, %330 : vector<16x32xf32>
    %332 = arith.addf %331, %216 : vector<16x32xf32>
    %c1_137 = arith.constant 1 : index
    %c0_138 = arith.constant 0 : index
    %c0_139 = arith.constant 0 : index
    %333 = vector.load %arg8[%c1_137, %c0_138, %c0_139] : memref<2x1x32xf32, #tpu.memory_space<vmem>>, vector<1x1x32xf32>
    %334 = vector.shape_cast %333 : vector<1x1x32xf32> to vector<1x32xf32>
    %c1_140 = arith.constant 1 : index
    %c0_141 = arith.constant 0 : index
    %c0_142 = arith.constant 0 : index
    %335 = vector.load %arg9[%c1_140, %c0_141, %c0_142] : memref<2x1x32xf32, #tpu.memory_space<vmem>>, vector<1x1x32xf32>
    %336 = vector.shape_cast %335 : vector<1x1x32xf32> to vector<1x32xf32>
    %cst_143 = arith.constant dense<0.000000e+00> : vector<16xf32>
    %337 = vector.multi_reduction <add>, %332, %cst_143 [1] : vector<16x32xf32> to vector<16xf32>
    %338 = vector.shape_cast %337 : vector<16xf32> to vector<16x1xf32>
    %cst_144 = arith.constant 3.200000e+01 : f32
    %339 = vector.broadcast %cst_144 : f32 to vector<16x1xf32>
    %340 = arith.divf %338, %339 : vector<16x1xf32>
    %341 = vector.broadcast %340 : vector<16x1xf32> to vector<16x32xf32>
    %342 = arith.subf %332, %341 : vector<16x32xf32>
    %343 = arith.mulf %342, %342 : vector<16x32xf32>
    %cst_145 = arith.constant dense<0.000000e+00> : vector<16xf32>
    %344 = vector.multi_reduction <add>, %343, %cst_145 [1] : vector<16x32xf32> to vector<16xf32>
    %345 = vector.shape_cast %344 : vector<16xf32> to vector<16x1xf32>
    %cst_146 = arith.constant 3.200000e+01 : f32
    %346 = vector.broadcast %cst_146 : f32 to vector<16x1xf32>
    %347 = arith.divf %345, %346 : vector<16x1xf32>
    %cst_147 = arith.constant 9.99999996E-13 : f32
    %348 = vector.broadcast %cst_147 : f32 to vector<16x1xf32>
    %349 = arith.addf %347, %348 : vector<16x1xf32>
    %350 = math.rsqrt %349 : vector<16x1xf32>
    %351 = vector.broadcast %350 : vector<16x1xf32> to vector<16x32xf32>
    %352 = arith.mulf %342, %351 : vector<16x32xf32>
    %353 = vector.broadcast %334 : vector<1x32xf32> to vector<16x32xf32>
    %354 = arith.mulf %352, %353 : vector<16x32xf32>
    %355 = vector.broadcast %336 : vector<1x32xf32> to vector<16x32xf32>
    %356 = arith.addf %354, %355 : vector<16x32xf32>
    %c1_148 = arith.constant 1 : index
    %c0_149 = arith.constant 0 : index
    %c0_150 = arith.constant 0 : index
    %357 = vector.load %arg10[%c1_148, %c0_149, %c0_150] : memref<2x32x64xbf16, #tpu.memory_space<vmem>>, vector<1x32x64xbf16>
    %358 = vector.shape_cast %357 : vector<1x32x64xbf16> to vector<32x64xbf16>
    %359 = arith.truncf %356 : vector<16x32xf32> to vector<16x32xbf16>
    %cst_151 = arith.constant dense<0.000000e+00> : vector<16x64xf32>
    %360 = tpu.matmul %359, %358, %cst_151 {dimension_numbers = #tpu.dot_dimension_numbers<[1], [0], [0], [1], [0, 0, 1, 1], [], []>} : vector<16x32xbf16>, vector<32x64xbf16>, vector<16x64xf32> -> vector<16x64xf32>
    %c1_152 = arith.constant 1 : index
    %c0_153 = arith.constant 0 : index
    %c0_154 = arith.constant 0 : index
    %361 = vector.load %arg11[%c1_152, %c0_153, %c0_154] : memref<2x1x64xf32, #tpu.memory_space<vmem>>, vector<1x1x64xf32>
    %362 = vector.shape_cast %361 : vector<1x1x64xf32> to vector<1x64xf32>
    %363 = vector.broadcast %362 : vector<1x64xf32> to vector<16x64xf32>
    %364 = arith.addf %360, %363 : vector<16x64xf32>
    %cst_155 = arith.constant 5.000000e-01 : f32
    %365 = vector.broadcast %cst_155 : f32 to vector<16x64xf32>
    %366 = arith.mulf %365, %364 : vector<16x64xf32>
    %cst_156 = arith.constant 0.707106769 : f32
    %367 = vector.broadcast %cst_156 : f32 to vector<16x64xf32>
    %368 = arith.mulf %364, %367 : vector<16x64xf32>
    %369 = math.erf %368 : vector<16x64xf32>
    %cst_157 = arith.constant 1.000000e+00 : f32
    %370 = vector.broadcast %cst_157 : f32 to vector<16x64xf32>
    %371 = arith.addf %370, %369 : vector<16x64xf32>
    %372 = arith.mulf %366, %371 : vector<16x64xf32>
    %c1_158 = arith.constant 1 : index
    %c0_159 = arith.constant 0 : index
    %c0_160 = arith.constant 0 : index
    %373 = vector.load %arg12[%c1_158, %c0_159, %c0_160] : memref<2x64x32xbf16, #tpu.memory_space<vmem>>, vector<1x64x32xbf16>
    %374 = vector.shape_cast %373 : vector<1x64x32xbf16> to vector<64x32xbf16>
    %375 = arith.truncf %372 : vector<16x64xf32> to vector<16x64xbf16>
    %cst_161 = arith.constant dense<0.000000e+00> : vector<16x32xf32>
    %376 = tpu.matmul %375, %374, %cst_161 {dimension_numbers = #tpu.dot_dimension_numbers<[1], [0], [0], [1], [0, 0, 1, 1], [], []>} : vector<16x64xbf16>, vector<64x32xbf16>, vector<16x32xf32> -> vector<16x32xf32>
    %c1_162 = arith.constant 1 : index
    %c0_163 = arith.constant 0 : index
    %c0_164 = arith.constant 0 : index
    %377 = vector.load %arg13[%c1_162, %c0_163, %c0_164] : memref<2x1x32xf32, #tpu.memory_space<vmem>>, vector<1x1x32xf32>
    %378 = vector.shape_cast %377 : vector<1x1x32xf32> to vector<1x32xf32>
    %379 = vector.broadcast %378 : vector<1x32xf32> to vector<16x32xf32>
    %380 = arith.addf %376, %379 : vector<16x32xf32>
    %381 = arith.addf %380, %356 : vector<16x32xf32>
    %c1_165 = arith.constant 1 : index
    %c0_166 = arith.constant 0 : index
    %c0_167 = arith.constant 0 : index
    %382 = vector.load %arg14[%c1_165, %c0_166, %c0_167] : memref<2x1x32xf32, #tpu.memory_space<vmem>>, vector<1x1x32xf32>
    %383 = vector.shape_cast %382 : vector<1x1x32xf32> to vector<1x32xf32>
    %c1_168 = arith.constant 1 : index
    %c0_169 = arith.constant 0 : index
    %c0_170 = arith.constant 0 : index
    %384 = vector.load %arg15[%c1_168, %c0_169, %c0_170] : memref<2x1x32xf32, #tpu.memory_space<vmem>>, vector<1x1x32xf32>
    %385 = vector.shape_cast %384 : vector<1x1x32xf32> to vector<1x32xf32>
    %cst_171 = arith.constant dense<0.000000e+00> : vector<16xf32>
    %386 = vector.multi_reduction <add>, %381, %cst_171 [1] : vector<16x32xf32> to vector<16xf32>
    %387 = vector.shape_cast %386 : vector<16xf32> to vector<16x1xf32>
    %cst_172 = arith.constant 3.200000e+01 : f32
    %388 = vector.broadcast %cst_172 : f32 to vector<16x1xf32>
    %389 = arith.divf %387, %388 : vector<16x1xf32>
    %390 = vector.broadcast %389 : vector<16x1xf32> to vector<16x32xf32>
    %391 = arith.subf %381, %390 : vector<16x32xf32>
    %392 = arith.mulf %391, %391 : vector<16x32xf32>
    %cst_173 = arith.constant dense<0.000000e+00> : vector<16xf32>
    %393 = vector.multi_reduction <add>, %392, %cst_173 [1] : vector<16x32xf32> to vector<16xf32>
    %394 = vector.shape_cast %393 : vector<16xf32> to vector<16x1xf32>
    %cst_174 = arith.constant 3.200000e+01 : f32
    %395 = vector.broadcast %cst_174 : f32 to vector<16x1xf32>
    %396 = arith.divf %394, %395 : vector<16x1xf32>
    %cst_175 = arith.constant 9.99999996E-13 : f32
    %397 = vector.broadcast %cst_175 : f32 to vector<16x1xf32>
    %398 = arith.addf %396, %397 : vector<16x1xf32>
    %399 = math.rsqrt %398 : vector<16x1xf32>
    %400 = vector.broadcast %399 : vector<16x1xf32> to vector<16x32xf32>
    %401 = arith.mulf %391, %400 : vector<16x32xf32>
    %402 = vector.broadcast %383 : vector<1x32xf32> to vector<16x32xf32>
    %403 = arith.mulf %401, %402 : vector<16x32xf32>
    %404 = vector.broadcast %385 : vector<1x32xf32> to vector<16x32xf32>
    %405 = arith.addf %403, %404 : vector<16x32xf32>
    %406 = vector.extract_strided_slice %405 {offsets = [0, 0], sizes = [1, 32], strides = [1, 1]} : vector<16x32xf32> to vector<1x32xf32>
    %c0_176 = arith.constant 0 : index
    %c0_177 = arith.constant 0 : index
    %407 = vector.load %arg16[%c0_176, %c0_177] : memref<32x32xbf16, #tpu.memory_space<vmem>>, vector<32x32xbf16>
    %408 = arith.truncf %406 : vector<1x32xf32> to vector<1x32xbf16>
    %cst_178 = arith.constant dense<0.000000e+00> : vector<1x32xf32>
    %409 = tpu.matmul %408, %407, %cst_178 {dimension_numbers = #tpu.dot_dimension_numbers<[1], [0], [0], [1], [0, 0, 1, 1], [], []>} : vector<1x32xbf16>, vector<32x32xbf16>, vector<1x32xf32> -> vector<1x32xf32>
    %c0_179 = arith.constant 0 : index
    %c0_180 = arith.constant 0 : index
    %410 = vector.load %arg17[%c0_179, %c0_180] : memref<1x32xf32, #tpu.memory_space<vmem>>, vector<1x32xf32>
    %411 = arith.addf %409, %410 : vector<1x32xf32>
    %412 = math.tanh %411 : vector<1x32xf32>
    %c0_181 = arith.constant 0 : index
    %c0_182 = arith.constant 0 : index
    %413 = vector.load %arg18[%c0_181, %c0_182] : memref<32x3xbf16, #tpu.memory_space<vmem>>, vector<32x3xbf16>
    %414 = arith.truncf %412 : vector<1x32xf32> to vector<1x32xbf16>
    %cst_183 = arith.constant dense<0.000000e+00> : vector<1x3xf32>
    %415 = tpu.matmul %414, %413, %cst_183 {dimension_numbers = #tpu.dot_dimension_numbers<[1], [0], [0], [1], [0, 0, 1, 1], [], []>} : vector<1x32xbf16>, vector<32x3xbf16>, vector<1x3xf32> -> vector<1x3xf32>
    %c0_184 = arith.constant 0 : index
    %c0_185 = arith.constant 0 : index
    %416 = vector.load %arg19[%c0_184, %c0_185] : memref<1x3xf32, #tpu.memory_space<vmem>>, vector<1x3xf32>
    %417 = arith.addf %415, %416 : vector<1x3xf32>
    %c0_186 = arith.constant 0 : index
    %c0_187 = arith.constant 0 : index
    %418 = vector.load %arg20[%c0_186, %c0_187] : memref<2x3xf32, #tpu.memory_space<vmem>>, vector<1x3xf32>
    tpu.vector_store %arg20[%c0_186, %c0_187], %417 {strides = array<i32>} : memref<2x3xf32, #tpu.memory_space<vmem>>, vector<1x3xf32>,
    %419 = vector.extract_strided_slice %405 {offsets = [8, 0], sizes = [1, 32], strides = [1, 1]} : vector<16x32xf32> to vector<1x32xf32>
    %c0_188 = arith.constant 0 : index
    %c0_189 = arith.constant 0 : index
    %420 = vector.load %arg16[%c0_188, %c0_189] : memref<32x32xbf16, #tpu.memory_space<vmem>>, vector<32x32xbf16>
    %421 = arith.truncf %419 : vector<1x32xf32> to vector<1x32xbf16>
    %cst_190 = arith.constant dense<0.000000e+00> : vector<1x32xf32>
    %422 = tpu.matmul %421, %420, %cst_190 {dimension_numbers = #tpu.dot_dimension_numbers<[1], [0], [0], [1], [0, 0, 1, 1], [], []>} : vector<1x32xbf16>, vector<32x32xbf16>, vector<1x32xf32> -> vector<1x32xf32>
    %c0_191 = arith.constant 0 : index
    %c0_192 = arith.constant 0 : index
    %423 = vector.load %arg17[%c0_191, %c0_192] : memref<1x32xf32, #tpu.memory_space<vmem>>, vector<1x32xf32>
    %424 = arith.addf %422, %423 : vector<1x32xf32>
    %425 = math.tanh %424 : vector<1x32xf32>
    %c0_193 = arith.constant 0 : index
    %c0_194 = arith.constant 0 : index
    %426 = vector.load %arg18[%c0_193, %c0_194] : memref<32x3xbf16, #tpu.memory_space<vmem>>, vector<32x3xbf16>
    %427 = arith.truncf %425 : vector<1x32xf32> to vector<1x32xbf16>
    %cst_195 = arith.constant dense<0.000000e+00> : vector<1x3xf32>
    %428 = tpu.matmul %427, %426, %cst_195 {dimension_numbers = #tpu.dot_dimension_numbers<[1], [0], [0], [1], [0, 0, 1, 1], [], []>} : vector<1x32xbf16>, vector<32x3xbf16>, vector<1x3xf32> -> vector<1x3xf32>
    %c0_196 = arith.constant 0 : index
    %c0_197 = arith.constant 0 : index
    %429 = vector.load %arg19[%c0_196, %c0_197] : memref<1x3xf32, #tpu.memory_space<vmem>>, vector<1x3xf32>
    %430 = arith.addf %428, %429 : vector<1x3xf32>
    %c1_198 = arith.constant 1 : index
    %c0_199 = arith.constant 0 : index
    %431 = vector.load %arg20[%c1_198, %c0_199] : memref<2x3xf32, #tpu.memory_space<vmem>>, vector<1x3xf32>
    tpu.vector_store %arg20[%c1_198, %c0_199], %430 {strides = array<i32>} : memref<2x3xf32, #tpu.memory_space<vmem>>, vector<1x3xf32>,
    return
  }
}

</mosaic_0001>

<llo_original>
// kernel: bert_classifier_forward.1
$region0: #{bert_classifier_forward.1}
  #allocation0 [shape = 'u32[]', space=smem, size = 0x4, offset = 0x4, fixed_abs, tag = 'smem constant byte address 0x4 - core index']
  #allocation1 [shape = 'u32[72,128]{1,0:T(1,128)}', space=vmem, size = 0x9000, scoped, tag = 'internal scratch']
  #allocation2 [shape = 'f32[16,32]{1,0:T(8,128)}', space=vmem, size = 0x2000, scoped, tag = 'scratch operand']
  %s0 = inlined_call_operand.vmem [shape: f32[16,32], index: 0, kind: input, shape index: {}]
  %s1 = inlined_call_operand.vmem [shape: f32[2,8], index: 1, kind: input, shape index: {}]
  %s2 = inlined_call_operand.vmem [shape: f32[1,32], index: 2, kind: input, shape index: {}]
  %s3 = inlined_call_operand.vmem [shape: f32[1,32], index: 3, kind: input, shape index: {}]
  %s4 = inlined_call_operand.vmem [shape: bf16[2,32,96], index: 4, kind: input, shape index: {}]
  %s5 = inlined_call_operand.vmem [shape: f32[2,1,96], index: 5, kind: input, shape index: {}]
  %s6 = inlined_call_operand.vmem [shape: bf16[2,32,32], index: 6, kind: input, shape index: {}]
  %s7 = inlined_call_operand.vmem [shape: f32[2,1,32], index: 7, kind: input, shape index: {}]
  %s8 = inlined_call_operand.vmem [shape: f32[2,1,32], index: 8, kind: input, shape index: {}]
  %s9 = inlined_call_operand.vmem [shape: f32[2,1,32], index: 9, kind: input, shape index: {}]
  %s10 = inlined_call_operand.vmem [shape: bf16[2,32,64], index: 10, kind: input, shape index: {}]
  %s11 = inlined_call_operand.vmem [shape: f32[2,1,64], index: 11, kind: input, shape index: {}]
  %s12 = inlined_call_operand.vmem [shape: bf16[2,64,32], index: 12, kind: input, shape index: {}]
  %s13 = inlined_call_operand.vmem [shape: f32[2,1,32], index: 13, kind: input, shape index: {}]
  %s14 = inlined_call_operand.vmem [shape: f32[2,1,32], index: 14, kind: input, shape index: {}]
  %s15 = inlined_call_operand.vmem [shape: f32[2,1,32], index: 15, kind: input, shape index: {}]
  %s16 = inlined_call_operand.vmem [shape: bf16[32,32], index: 16, kind: input, shape index: {}]
  %s17 = inlined_call_operand.vmem [shape: f32[1,32], index: 17, kind: input, shape index: {}]
  %s18 = inlined_call_operand.vmem [shape: bf16[32,3], index: 18, kind: input, shape index: {}]
  %s19 = inlined_call_operand.vmem [shape: f32[1,3], index: 19, kind: input, shape index: {}]
  %s20 = inlined_call_operand.hbm [shape: f32[2,3], index: 20, kind: output, shape index: {}]
  %s21 = sld [smem:[#allocation0]]
  $region90: #{bert_classifier_forward.1} parent=0
    _
  %s23 = ssub.s32 1, %s21
  %s24 = scalar_select 0, %s23, %s21
  $region1: #{bert_classifier_forward.1} parent=0
    #allocation3 [shape = 'u8[1024]{0}', space=vmem, size = 0x400, scoped, tag = 'output window, operand 0, single buffered']
    #allocation4 [shape = 's32[1]{0}', space=sflag, size = 0x4, scoped, tag = 'scoped memory for bert_classifier_forward.1']
    %25 = vsyncpa [#allocation4], 0
    // Predicated region
    $region2: #{bert_classifier_forward.1} parent=1 // pred_check
      _
    $region3: #{bert_classifier_forward.1} parent=1 // pred_check_branch
      %27 = sbr.rel (0) target = $region5
    $region4: #{bert_classifier_forward.1} parent=1 // pred_region
      _
    $region5: #{bert_classifier_forward.1} parent=1 // pred_fallthru
      _
    // Predicated region
    $region6: #{bert_classifier_forward.1} parent=1 // pred_check
      _
    $region7: #{bert_classifier_forward.1} parent=1 // pred_check_branch
      %29 = sbr.rel (0) target = $region9
    $region8: #{bert_classifier_forward.1} parent=1 // pred_region
      _
    $region9: #{bert_classifier_forward.1} parent=1 // pred_fallthru
      _
    // Predicated region
    $region10: #{bert_classifier_forward.1} parent=1 // pred_check
      _
    $region11: #{bert_classifier_forward.1} parent=1 // pred_check_branch
      %31 = sbr.rel (0) target = $region13
    $region12: #{bert_classifier_forward.1} parent=1 // pred_region
      _
    $region13: #{bert_classifier_forward.1} parent=1 // pred_fallthru
      _
    // Predicated region
    $region14: #{bert_classifier_forward.1} parent=1 // pred_check
      _
    $region15: #{bert_classifier_forward.1} parent=1 // pred_check_branch
      %33 = sbr.rel (0) target = $region17
    $region16: #{bert_classifier_forward.1} parent=1 // pred_region
      _
    $region17: #{bert_classifier_forward.1} parent=1 // pred_fallthru
      _
    // Predicated region
    $region18: #{bert_classifier_forward.1} parent=1 // pred_check
      _
    $region19: #{bert_classifier_forward.1} parent=1 // pred_check_branch
      %35 = sbr.rel (0) target = $region21
    $region20: #{bert_classifier_forward.1} parent=1 // pred_region
      _
    $region21: #{bert_classifier_forward.1} parent=1 // pred_fallthru
      _
    // Predicated region
    $region22: #{bert_classifier_forward.1} parent=1 // pred_check
      _
    $region23: #{bert_classifier_forward.1} parent=1 // pred_check_branch
      %37 = sbr.rel (0) target = $region25
    $region24: #{bert_classifier_forward.1} parent=1 // pred_region
      _
    $region25: #{bert_classifier_forward.1} parent=1 // pred_fallthru
      _
    // Predicated region
    $region26: #{bert_classifier_forward.1} parent=1 // pred_check
      _
    $region27: #{bert_classifier_forward.1} parent=1 // pred_check_branch
      %39 = sbr.rel (0) target = $region29
    $region28: #{bert_classifier_forward.1} parent=1 // pred_region
      _
    $region29: #{bert_classifier_forward.1} parent=1 // pred_fallthru
      _
    // Predicated region
    $region30: #{bert_classifier_forward.1} parent=1 // pred_check
      _
    $region31: #{bert_classifier_forward.1} parent=1 // pred_check_branch
      %41 = sbr.rel (0) target = $region33
    $region32: #{bert_classifier_forward.1} parent=1 // pred_region
      _
    $region33: #{bert_classifier_forward.1} parent=1 // pred_fallthru
      _
    // Predicated region
    $region34: #{bert_classifier_forward.1} parent=1 // pred_check
      _
    $region35: #{bert_classifier_forward.1} parent=1 // pred_check_branch
      %43 = sbr.rel (0) target = $region37
    $region36: #{bert_classifier_forward.1} parent=1 // pred_region
      _
    $region37: #{bert_classifier_forward.1} parent=1 // pred_fallthru
      _
    // Predicated region
    $region38: #{bert_classifier_forward.1} parent=1 // pred_check
      _
    $region39: #{bert_classifier_forward.1} parent=1 // pred_check_branch
      %45 = sbr.rel (0) target = $region41
    $region40: #{bert_classifier_forward.1} parent=1 // pred_region
      _
    $region41: #{bert_classifier_forward.1} parent=1 // pred_fallthru
      _
    // Predicated region
    $region42: #{bert_classifier_forward.1} parent=1 // pred_check
      _
    $region43: #{bert_classifier_forward.1} parent=1 // pred_check_branch
      %47 = sbr.rel (0) target = $region45
    $region44: #{bert_classifier_forward.1} parent=1 // pred_region
      _
    $region45: #{bert_classifier_forward.1} parent=1 // pred_fallthru
      _
    // Predicated region
    $region46: #{bert_classifier_forward.1} parent=1 // pred_check
      _
    $region47: #{bert_classifier_forward.1} parent=1 // pred_check_branch
      %49 = sbr.rel (0) target = $region49
    $region48: #{bert_classifier_forward.1} parent=1 // pred_region
      _
    $region49: #{bert_classifier_forward.1} parent=1 // pred_fallthru
      _
    // Predicated region
    $region50: #{bert_classifier_forward.1} parent=1 // pred_check
      _
    $region51: #{bert_classifier_forward.1} parent=1 // pred_check_branch
      %51 = sbr.rel (0) target = $region53
    $region52: #{bert_classifier_forward.1} parent=1 // pred_region
      _
    $region53: #{bert_classifier_forward.1} parent=1 // pred_fallthru
      _
    // Predicated region
    $region54: #{bert_classifier_forward.1} parent=1 // pred_check
      _
    $region55: #{bert_classifier_forward.1} parent=1 // pred_check_branch
      %53 = sbr.rel (0) target = $region57
    $region56: #{bert_classifier_forward.1} parent=1 // pred_region
      _
    $region57: #{bert_classifier_forward.1} parent=1 // pred_fallthru
      _
    // Predicated region
    $region58: #{bert_classifier_forward.1} parent=1 // pred_check
      _
    $region59: #{bert_classifier_forward.1} parent=1 // pred_check_branch
      %55 = sbr.rel (0) target = $region61
    $region60: #{bert_classifier_forward.1} parent=1 // pred_region
      _
    $region61: #{bert_classifier_forward.1} parent=1 // pred_fallthru
      _
    // Predicated region
    $region62: #{bert_classifier_forward.1} parent=1 // pred_check
      _
    $region63: #{bert_classifier_forward.1} parent=1 // pred_check_branch
      %57 = sbr.rel (0) target = $region65
    $region64: #{bert_classifier_forward.1} parent=1 // pred_region
      _
    $region65: #{bert_classifier_forward.1} parent=1 // pred_fallthru
      _
    // Predicated region
    $region66: #{bert_classifier_forward.1} parent=1 // pred_check
      _
    $region67: #{bert_classifier_forward.1} parent=1 // pred_check_branch
      %59 = sbr.rel (0) target = $region69
    $region68: #{bert_classifier_forward.1} parent=1 // pred_region
      _
    $region69: #{bert_classifier_forward.1} parent=1 // pred_fallthru
      _
    // Predicated region
    $region70: #{bert_classifier_forward.1} parent=1 // pred_check
      _
    $region71: #{bert_classifier_forward.1} parent=1 // pred_check_branch
      %61 = sbr.rel (0) target = $region73
    $region72: #{bert_classifier_forward.1} parent=1 // pred_region
      _
    $region73: #{bert_classifier_forward.1} parent=1 // pred_fallthru
      _
    // Predicated region
    $region74: #{bert_classifier_forward.1} parent=1 // pred_check
      _
    $region75: #{bert_classifier_forward.1} parent=1 // pred_check_branch
      %63 = sbr.rel (0) target = $region77
    $region76: #{bert_classifier_forward.1} parent=1 // pred_region
      _
    $region77: #{bert_classifier_forward.1} parent=1 // pred_fallthru
      _
    // Predicated region
    $region78: #{bert_classifier_forward.1} parent=1 // pred_check
      _
    $region79: #{bert_classifier_forward.1} parent=1 // pred_check_branch
      %65 = sbr.rel (0) target = $region81
    $region80: #{bert_classifier_forward.1} parent=1 // pred_region
      _
    $region81: #{bert_classifier_forward.1} parent=1 // pred_fallthru
      _
    %v67 = vld [vmem:[%s0] sm:$0xff]
    %v68 = vld [vmem:[%s0 + $0x8] sm:$0xff]
    %v69 = vld [vmem:[%s2] sm:$0x1]
    %v70 = vld [vmem:[%s3] sm:$0x1]
    %vm71 = vcmask 261120
    %v72 = vsel %vm71, %v67, 0.0
    %73 = vadd.xlane.f32.xlu0 %v72
    %v74 = vpop.xlane.xlu0 %73
    %v75 = vsel %vm71, %v68, 0.0
    %76 = vadd.xlane.f32.xlu0 %v75
    %v77 = vpop.xlane.xlu0 %76
    %v78 = vrcp.pop 32.0
    %v79 = vmul.f32 32.0, %v78
    %v80 = vsub.f32 1.0, %v79
    %v81 = vmul.f32 %v78, %v80
    %v82 = vadd.f32 %v78, %v81
    %vm83 = vweird.f32 %v78
    %v84 = vsel %vm83, %v78, %v82
    %v85 = vmul.f32 %v74, %v84
    %v86 = vmul.f32 %v77, %v84
    %v87 = vsub.f32 %v67, %v85
    %v88 = vsub.f32 %v68, %v86
    %v89 = vmul.f32 %v87, %v87
    %v90 = vmul.f32 %v88, %v88
    %v91 = vsel %vm71, %v89, 0.0
    %92 = vadd.xlane.f32.xlu0 %v91
    %v93 = vpop.xlane.xlu0 %92
    %v94 = vsel %vm71, %v90, 0.0
    %95 = vadd.xlane.f32.xlu0 %v94
    %v96 = vpop.xlane.xlu0 %95
    %v97 = vmul.f32 %v93, %v84
    %v98 = vmul.f32 %v96, %v84
    %v99 = vadd.f32 %v97, 1e-12
    %v100 = vadd.f32 %v98, 1e-12
    %v101 = vrsqrt.pop %v99
    %v102 = vmul.f32 %v101, %v99
    %v103 = vmul.f32 %v102, %v101
    %v104 = vmul.f32 0.5, %v103
    %v105 = vsub.f32 1.5, %v104
    %v106 = vmul.f32 %v101, %v105
    %vm107 = vweird.f32 %v99
    %vm108 = vweird.f32 %v101
    %vm109 = vmor %vm107, %vm108
    %v110 = vsel %vm109, %v101, %v106
    %v111 = vrsqrt.pop %v100
    %v112 = vmul.f32 %v111, %v100
    %v113 = vmul.f32 %v112, %v111
    %v114 = vmul.f32 0.5, %v113
    %v115 = vsub.f32 1.5, %v114
    %v116 = vmul.f32 %v111, %v115
    %vm117 = vweird.f32 %v100
    %vm118 = vweird.f32 %v111
    %vm119 = vmor %vm117, %vm118
    %v120 = vsel %vm119, %v111, %v116
    %v121 = vmul.f32 %v87, %v110
    %v122 = vmul.f32 %v88, %v120
    %v124 = vperm.slane %v69, 0
    %v126 = vmul.f32 %v121, %v124
    %v127 = vmul.f32 %v122, %v124
    %v129 = vperm.slane %v70, 0
    %v131 = vadd.f32 %v126, %v129
    %v132 = vadd.f32 %v127, %v129
    %v133 = vld [vmem:[%s1] sm:$0x3]
    %v134 = vsub.f32 1.0, %v133
    %v135 = vmul.f32 %v134, -1e+09
    %v136 = vld [vmem:[%s4] sm:$0xf]
    %v137 = vld [vmem:[%s4 + $0x4] sm:$0xf]
    %v138 = vld [vmem:[%s4 + $0x8] sm:$0xf]
    %v139 = vld [vmem:[%s4 + $0xc] sm:$0xf]
    %v140 = vpack.c.bf16 %v132, %v131
    %v141 = vld [vmem:[%s5] sm:$0x1]
    %v143 = vperm.slane %v141, 0
    %v149 = vunpack.c.l.b16 %v136
    %v150 = vunpack.c.l.b16 %v137
    %v151 = vunpack.c.l.b16 %v138
    %v152 = vunpack.c.l.b16 %v139
    %v153 = vpack.c.b16 %v150, %v149
    %v154 = vpack.c.b16 %v152, %v151
    %v158 = vsel %vm71, %v140, 0
    %160 = vmatpush.bf16.msra.mxu0 0
    %161 = vmatpush.bf16.msra.mxu0 0
    %162 = vmatpush.bf16.msra.mxu0 0
    %163 = vmatpush.bf16.msra.mxu0 0
    %164 = vmatpush.bf16.msra.mxu0 0
    %165 = vmatpush.bf16.msra.mxu0 0
    %166 = vmatpush.bf16.msra.mxu0 %v154
    %167 = vmatpush.bf16.msra.mxu0 %v153
    %168 = vmatmul.bf16.gmra.mxu0 %v158
    %v169 = vpop.f32.mrf.mxu0
    %v170 = vadd.f32 %v143, %v169
    %v171 = vpop.f32.mrf.mxu0
    %v172 = vadd.f32 %v143, %v171
    %173 = vdwg.mxu0
    %v174 = vpack.c.bf16 %v170, %v170
    %176 = vrot.lane.b32.xlu0 %v174, 96
    %v177 = vpop.permute.xlu0 %176
    %vm178 = vcmask 130048
    %v180 = vsel %vm178, %v174, 0
    %v183 = vsel %vm178, %v177, 0
    %185 = vmatpush.bf16.xpose.msra.mxu0 0
    %186 = vmatpush.bf16.xpose.msra.mxu0 0
    %187 = vmatpush.bf16.xpose.msra.mxu0 0
    %188 = vmatpush.bf16.xpose.msra.mxu0 0
    %189 = vmatpush.bf16.xpose.msra.mxu0 0
    %190 = vmatpush.bf16.xpose.msra.mxu0 0
    %191 = vmatpush.bf16.xpose.msra.mxu0 0
    %192 = vmatpush.bf16.xpose.msra.mxu0 %v183
    %193 = vmatmul.bf16.gmra.mxu0 %v180
    %v194 = vpop.f32.mrf.mxu0
    %v195 = vadd.f32 0.0, %v194
    %v196 = vpop.f32.mrf.mxu0
    %197 = vdwg.mxu0
    %v198 = vmul.f32 %v195, 0.25
    %v199 = vperm.slane %v135, 0
    %v200 = vadd.f32 %v198, %v199
    %vm201 = vcmask 64512
    %v202 = vsel %vm201, %v200, -inf
    %203 = vmax.xlane.f32.xlu0 %v202
    %v204 = vpop.xlane.xlu0 %203
    %v205 = vsub.f32 %v200, %v204
    %v206 = vmul.f32 %v205, 1.442695
    %v207 = vpow.pop %v206
    %v208 = vsel %vm201, %v207, 0.0
    %209 = vadd.xlane.f32.xlu0 %v208
    %v210 = vpop.xlane.xlu0 %209
    %v211 = vrcp.pop %v210
    %v212 = vmul.f32 %v207, %v211
    %v213 = vpack.c.bf16 %v212, %v212
    %214 = vrot.lane.b32.xlu0 %v174, 64
    %v215 = vpop.permute.xlu0 %214
    %v217 = vsel %vm201, %v213, 0
    %vm219 = vcmask 1043456
    %v221 = vsel %vm219, %v215, 0
    %223 = vmatpush.bf16.msra.mxu0 0
    %224 = vmatpush.bf16.msra.mxu0 0
    %225 = vmatpush.bf16.msra.mxu0 0
    %226 = vmatpush.bf16.msra.mxu0 0
    %227 = vmatpush.bf16.msra.mxu0 0
    %228 = vmatpush.bf16.msra.mxu0 0
    %229 = vmatpush.bf16.msra.mxu0 0
    %230 = vmatpush.bf16.msra.mxu0 %v221
    %231 = vmatmul.bf16.gmra.mxu0 %v217
    %v232 = vpop.f32.mrf.mxu0
    %v233 = vadd.f32 0.0, %v232
    %v234 = vpop.f32.mrf.mxu0
    %235 = vdwg.mxu0
    %236 = vst.msk [vmem:[#allocation2] sm:$0xff] %vm178, %v233
    %237 = vrot.lane.b32.xlu0 %v174, 112
    %v238 = vpop.permute.xlu0 %237
    %239 = vrot.lane.b32.xlu0 %v174, 80
    %v240 = vpop.permute.xlu0 %239
    %v242 = vsel %vm178, %v238, 0
    %v245 = vsel %vm178, %v240, 0
    %247 = vmatpush.bf16.xpose.msra.mxu0 0
    %248 = vmatpush.bf16.xpose.msra.mxu0 0
    %249 = vmatpush.bf16.xpose.msra.mxu0 0
    %250 = vmatpush.bf16.xpose.msra.mxu0 0
    %251 = vmatpush.bf16.xpose.msra.mxu0 0
    %252 = vmatpush.bf16.xpose.msra.mxu0 0
    %253 = vmatpush.bf16.xpose.msra.mxu0 0
    %254 = vmatpush.bf16.xpose.msra.mxu0 %v245
    %255 = vmatmul.bf16.gmra.mxu0 %v242
    %v256 = vpop.f32.mrf.mxu0
    %v257 = vadd.f32 0.0, %v256
    %v258 = vpop.f32.mrf.mxu0
    %259 = vdwg.mxu0
    %v260 = vmul.f32 %v257, 0.25
    %v261 = vadd.f32 %v260, %v199
    %v262 = vsel %vm201, %v261, -inf
    %263 = vmax.xlane.f32.xlu0 %v262
    %v264 = vpop.xlane.xlu0 %263
    %v265 = vsub.f32 %v261, %v264
    %v266 = vmul.f32 %v265, 1.442695
    %v267 = vpow.pop %v266
    %v268 = vsel %vm201, %v267, 0.0
    %269 = vadd.xlane.f32.xlu0 %v268
    %v270 = vpop.xlane.xlu0 %269
    %v271 = vrcp.pop %v270
    %v272 = vmul.f32 %v267, %v271
    %v273 = vpack.c.bf16 %v272, %v272
    %274 = vrot.lane.b32.xlu0 %v174, 48
    %v275 = vpop.permute.xlu0 %274
    %v277 = vsel %vm201, %v273, 0
    %v280 = vsel %vm219, %v275, 0
    %282 = vmatpush.bf16.msra.mxu0 0
    %283 = vmatpush.bf16.msra.mxu0 0
    %284 = vmatpush.bf16.msra.mxu0 0
    %285 = vmatpush.bf16.msra.mxu0 0
    %286 = vmatpush.bf16.msra.mxu0 0
    %287 = vmatpush.bf16.msra.mxu0 0
    %288 = vmatpush.bf16.msra.mxu0 0
    %289 = vmatpush.bf16.msra.mxu0 %v280
    %290 = vmatmul.bf16.gmra.mxu0 %v277
    %v291 = vpop.f32.mrf.mxu0
    %v292 = vadd.f32 0.0, %v291
    %v293 = vpop.f32.mrf.mxu0
    %294 = vdwg.mxu0
    %296 = vrot.lane.b32.xlu0 %v292, 16
    %v297 = vpop.permute.xlu0 %296
    %vm299 = vcmask 261248
    %300 = vst.msk [vmem:[#allocation2] sm:$0xff] %vm299, %v297
    %v301 = vpack.c.bf16 %v172, %v172
    %303 = vrot.lane.b32.xlu0 %v301, 96
    %v304 = vpop.permute.xlu0 %303
    %v306 = vsel %vm178, %v301, 0
    %v309 = vsel %vm178, %v304, 0
    %311 = vmatpush.bf16.xpose.msra.mxu0 0
    %312 = vmatpush.bf16.xpose.msra.mxu0 0
    %313 = vmatpush.bf16.xpose.msra.mxu0 0
    %314 = vmatpush.bf16.xpose.msra.mxu0 0
    %315 = vmatpush.bf16.xpose.msra.mxu0 0
    %316 = vmatpush.bf16.xpose.msra.mxu0 0
    %317 = vmatpush.bf16.xpose.msra.mxu0 0
    %318 = vmatpush.bf16.xpose.msra.mxu0 %v309
    %319 = vmatmul.bf16.gmra.mxu0 %v306
    %v320 = vpop.f32.mrf.mxu0
    %v321 = vadd.f32 0.0, %v320
    %v322 = vpop.f32.mrf.mxu0
    %323 = vdwg.mxu0
    %v324 = vmul.f32 %v321, 0.25
    %v325 = vperm.slane %v135, 1
    %v326 = vadd.f32 %v324, %v325
    %v327 = vsel %vm201, %v326, -inf
    %328 = vmax.xlane.f32.xlu0 %v327
    %v329 = vpop.xlane.xlu0 %328
    %v330 = vsub.f32 %v326, %v329
    %v331 = vmul.f32 %v330, 1.442695
    %v332 = vpow.pop %v331
    %v333 = vsel %vm201, %v332, 0.0
    %334 = vadd.xlane.f32.xlu0 %v333
    %v335 = vpop.xlane.xlu0 %334
    %v336 = vrcp.pop %v335
    %v337 = vmul.f32 %v332, %v336
    %v338 = vpack.c.bf16 %v337, %v337
    %339 = vrot.lane.b32.xlu0 %v301, 64
    %v340 = vpop.permute.xlu0 %339
    %v342 = vsel %vm201, %v338, 0
    %v345 = vsel %vm219, %v340, 0
    %347 = vmatpush.bf16.msra.mxu0 0
    %348 = vmatpush.bf16.msra.mxu0 0
    %349 = vmatpush.bf16.msra.mxu0 0
    %350 = vmatpush.bf16.msra.mxu0 0
    %351 = vmatpush.bf16.msra.mxu0 0
    %352 = vmatpush.bf16.msra.mxu0 0
    %353 = vmatpush.bf16.msra.mxu0 0
    %354 = vmatpush.bf16.msra.mxu0 %v345
    %355 = vmatmul.bf16.gmra.mxu0 %v342
    %v356 = vpop.f32.mrf.mxu0
    %v357 = vadd.f32 0.0, %v356
    %v358 = vpop.f32.mrf.mxu0
    %359 = vdwg.mxu0
    %360 = vst.msk [vmem:[#allocation2 + $0x8] sm:$0xff] %vm178, %v357
    %361 = vrot.lane.b32.xlu0 %v301, 112
    %v362 = vpop.permute.xlu0 %361
    %363 = vrot.lane.b32.xlu0 %v301, 80
    %v364 = vpop.permute.xlu0 %363
    %v366 = vsel %vm178, %v362, 0
    %v369 = vsel %vm178, %v364, 0
    %371 = vmatpush.bf16.xpose.msra.mxu0 0
    %372 = vmatpush.bf16.xpose.msra.mxu0 0
    %373 = vmatpush.bf16.xpose.msra.mxu0 0
    %374 = vmatpush.bf16.xpose.msra.mxu0 0
    %375 = vmatpush.bf16.xpose.msra.mxu0 0
    %376 = vmatpush.bf16.xpose.msra.mxu0 0
    %377 = vmatpush.bf16.xpose.msra.mxu0 0
    %378 = vmatpush.bf16.xpose.msra.mxu0 %v369
    %379 = vmatmul.bf16.gmra.mxu0 %v366
    %v380 = vpop.f32.mrf.mxu0
    %v381 = vadd.f32 0.0, %v380
    %v382 = vpop.f32.mrf.mxu0
    %383 = vdwg.mxu0
    %v384 = vmul.f32 %v381, 0.25
    %v385 = vadd.f32 %v384, %v325
    %v386 = vsel %vm201, %v385, -inf
    %387 = vmax.xlane.f32.xlu0 %v386
    %v388 = vpop.xlane.xlu0 %387
    %v389 = vsub.f32 %v385, %v388
    %v390 = vmul.f32 %v389, 1.442695
    %v391 = vpow.pop %v390
    %v392 = vsel %vm201, %v391, 0.0
    %393 = vadd.xlane.f32.xlu0 %v392
    %v394 = vpop.xlane.xlu0 %393
    %v395 = vrcp.pop %v394
    %v396 = vmul.f32 %v391, %v395
    %v397 = vpack.c.bf16 %v396, %v396
    %398 = vrot.lane.b32.xlu0 %v301, 48
    %v399 = vpop.permute.xlu0 %398
    %v401 = vsel %vm201, %v397, 0
    %v404 = vsel %vm219, %v399, 0
    %406 = vmatpush.bf16.msra.mxu0 0
    %407 = vmatpush.bf16.msra.mxu0 0
    %408 = vmatpush.bf16.msra.mxu0 0
    %409 = vmatpush.bf16.msra.mxu0 0
    %410 = vmatpush.bf16.msra.mxu0 0
    %411 = vmatpush.bf16.msra.mxu0 0
    %412 = vmatpush.bf16.msra.mxu0 0
    %413 = vmatpush.bf16.msra.mxu0 %v404
    %414 = vmatmul.bf16.gmra.mxu0 %v401
    %v415 = vpop.f32.mrf.mxu0
    %v416 = vadd.f32 0.0, %v415
    %v417 = vpop.f32.mrf.mxu0
    %418 = vdwg.mxu0
    %420 = vrot.lane.b32.xlu0 %v416, 16
    %v421 = vpop.permute.xlu0 %420
    %423 = vst.msk [vmem:[#allocation2 + $0x8] sm:$0xff] %vm299, %v421
    %v424 = vld [vmem:[#allocation2] sm:$0xff]
    %v425 = vld [vmem:[#allocation2 + $0x8] sm:$0xff]
    %v426 = vld [vmem:[%s6] sm:$0xf]
    %v427 = vld [vmem:[%s6 + $0x4] sm:$0xf]
    %v428 = vld [vmem:[%s6 + $0x8] sm:$0xf]
    %v429 = vld [vmem:[%s6 + $0xc] sm:$0xf]
    %v430 = vpack.c.bf16 %v425, %v424
    %v431 = vld [vmem:[%s7] sm:$0x1]
    %v433 = vperm.slane %v431, 0
    %v439 = vunpack.c.l.b16 %v426
    %v440 = vunpack.c.l.b16 %v427
    %v441 = vunpack.c.l.b16 %v428
    %v442 = vunpack.c.l.b16 %v429
    %v443 = vpack.c.b16 %v440, %v439
    %v444 = vpack.c.b16 %v442, %v441
    %v448 = vsel %vm71, %v430, 0
    %450 = vmatpush.bf16.msra.mxu0 0
    %451 = vmatpush.bf16.msra.mxu0 0
    %452 = vmatpush.bf16.msra.mxu0 0
    %453 = vmatpush.bf16.msra.mxu0 0
    %454 = vmatpush.bf16.msra.mxu0 0
    %455 = vmatpush.bf16.msra.mxu0 0
    %456 = vmatpush.bf16.msra.mxu0 %v444
    %457 = vmatpush.bf16.msra.mxu0 %v443
    %458 = vmatmul.bf16.gmra.mxu0 %v448
    %v459 = vpop.f32.mrf.mxu0
    %v460 = vadd.f32 %v433, %v459
    %v461 = vpop.f32.mrf.mxu0
    %v462 = vadd.f32 %v433, %v461
    %463 = vdwg.mxu0
    %v464 = vadd.f32 %v460, %v131
    %v465 = vadd.f32 %v462, %v132
    %v466 = vld [vmem:[%s8] sm:$0x1]
    %v467 = vld [vmem:[%s9] sm:$0x1]
    %v468 = vsel %vm71, %v464, 0.0
    %469 = vadd.xlane.f32.xlu0 %v468
    %v470 = vpop.xlane.xlu0 %469
    %v471 = vsel %vm71, %v465, 0.0
    %472 = vadd.xlane.f32.xlu0 %v471
    %v473 = vpop.xlane.xlu0 %472
    %v474 = vmul.f32 %v470, %v84
    %v475 = vmul.f32 %v473, %v84
    %v476 = vsub.f32 %v464, %v474
    %v477 = vsub.f32 %v465, %v475
    %v478 = vmul.f32 %v476, %v476
    %v479 = vmul.f32 %v477, %v477
    %v480 = vsel %vm71, %v478, 0.0
    %481 = vadd.xlane.f32.xlu0 %v480
    %v482 = vpop.xlane.xlu0 %481
    %v483 = vsel %vm71, %v479, 0.0
    %484 = vadd.xlane.f32.xlu0 %v483
    %v485 = vpop.xlane.xlu0 %484
    %v486 = vmul.f32 %v482, %v84
    %v487 = vmul.f32 %v485, %v84
    %v488 = vadd.f32 %v486, 1e-12
    %v489 = vadd.f32 %v487, 1e-12
    %v490 = vrsqrt.pop %v488
    %v491 = vmul.f32 %v490, %v488
    %v492 = vmul.f32 %v491, %v490
    %v493 = vmul.f32 0.5, %v492
    %v494 = vsub.f32 1.5, %v493
    %v495 = vmul.f32 %v490, %v494
    %vm496 = vweird.f32 %v488
    %vm497 = vweird.f32 %v490
    %vm498 = vmor %vm496, %vm497
    %v499 = vsel %vm498, %v490, %v495
    %v500 = vrsqrt.pop %v489
    %v501 = vmul.f32 %v500, %v489
    %v502 = vmul.f32 %v501, %v500
    %v503 = vmul.f32 0.5, %v502
    %v504 = vsub.f32 1.5, %v503
    %v505 = vmul.f32 %v500, %v504
    %vm506 = vweird.f32 %v489
    %vm507 = vweird.f32 %v500
    %vm508 = vmor %vm506, %vm507
    %v509 = vsel %vm508, %v500, %v505
    %v510 = vmul.f32 %v476, %v499
    %v511 = vmul.f32 %v477, %v509
    %v513 = vperm.slane %v466, 0
    %v515 = vmul.f32 %v510, %v513
    %v516 = vmul.f32 %v511, %v513
    %v518 = vperm.slane %v467, 0
    %v520 = vadd.f32 %v515, %v518
    %v521 = vadd.f32 %v516, %v518
    %v522 = vld [vmem:[%s10] sm:$0xf]
    %v523 = vld [vmem:[%s10 + $0x4] sm:$0xf]
    %v524 = vld [vmem:[%s10 + $0x8] sm:$0xf]
    %v525 = vld [vmem:[%s10 + $0xc] sm:$0xf]
    %v526 = vpack.c.bf16 %v521, %v520
    %v527 = vld [vmem:[%s11] sm:$0x1]
    %v529 = vperm.slane %v527, 0
    %v535 = vunpack.c.l.b16 %v522
    %v536 = vunpack.c.l.b16 %v523
    %v537 = vunpack.c.l.b16 %v524
    %v538 = vunpack.c.l.b16 %v525
    %v539 = vpack.c.b16 %v536, %v535
    %v540 = vpack.c.b16 %v538, %v537
    %v544 = vsel %vm71, %v526, 0
    %546 = vmatpush.bf16.msra.mxu0 0
    %547 = vmatpush.bf16.msra.mxu0 0
    %548 = vmatpush.bf16.msra.mxu0 0
    %549 = vmatpush.bf16.msra.mxu0 0
    %550 = vmatpush.bf16.msra.mxu0 0
    %551 = vmatpush.bf16.msra.mxu0 0
    %552 = vmatpush.bf16.msra.mxu0 %v540
    %553 = vmatpush.bf16.msra.mxu0 %v539
    %554 = vmatmul.bf16.gmra.mxu0 %v544
    %v555 = vpop.f32.mrf.mxu0
    %v556 = vadd.f32 %v529, %v555
    %v557 = vpop.f32.mrf.mxu0
    %v558 = vadd.f32 %v529, %v557
    %559 = vdwg.mxu0
    %v560 = vmul.f32 %v556, 0.5
    %v561 = vmul.f32 %v558, 0.5
    %v562 = vmul.f32 %v556, 0.70710677
    %v563 = vmul.f32 %v558, 0.70710677
    %v564 = vmul.f32 %v562, %v562
    %v565 = vmin.f32 16.0, %v564
    %v566 = vmul.f32 %v565, 2.1237322e-06
    %v567 = vadd.f32 %v566, 0.00028619796
    %v568 = vmul.f32 %v565, %v567
    %v569 = vadd.f32 %v568, 0.0036580483
    %v570 = vmul.f32 %v565, %v569
    %v571 = vadd.f32 %v570, 0.05243302
    %v572 = vmul.f32 %v565, %v571
    %v573 = vadd.f32 %v572, 0.18741608
    %v574 = vmul.f32 %v565, %v573
    %v575 = vadd.f32 %v574, 1.1283791
    %v576 = vmul.f32 %v562, %v575
    %v577 = vmul.f32 %v565, 3.8918573e-05
    %v578 = vadd.f32 %v577, 0.001143296
    %v579 = vmul.f32 %v565, %v578
    %v580 = vadd.f32 %v579, 0.014752088
    %v581 = vmul.f32 %v565, %v580
    %v582 = vadd.f32 %v581, 0.112945676
    %v583 = vmul.f32 %v565, %v582
    %v584 = vadd.f32 %v583, 0.4994258
    %v585 = vmul.f32 %v565, %v584
    %v586 = vadd.f32 %v585, 1.0
    %v587 = vrcp.pop %v586
    %v588 = vmul.f32 %v586, %v587
    %v589 = vsub.f32 1.0, %v588
    %v590 = vmul.f32 %v587, %v589
    %v591 = vadd.f32 %v587, %v590
    %vm592 = vweird.f32 %v586
    %vm593 = vweird.f32 %v587
    %vm594 = vmor %vm592, %vm593
    %v595 = vsel %vm594, %v587, %v591
    %v596 = vand.u32 2147483647, %v586
    %vm597 = vcmp.eq.f32.partialorder %v596, 8.507059e+37
    %v598 = vand.u32 %v586, 2147483648
    %v599 = vor.u32 1.1754944e-38, %v598
    %v600 = vsel %vm597, %v599, %v595
    %v601 = vmul.f32 %v576, %v600
    %v602 = vmin.f32 %v601, 1.0
    %v603 = vmax.f32 %v602, -1.0
    %v604 = vmul.f32 %v563, %v563
    %v605 = vmin.f32 16.0, %v604
    %v606 = vmul.f32 %v605, 2.1237322e-06
    %v607 = vadd.f32 %v606, 0.00028619796
    %v608 = vmul.f32 %v605, %v607
    %v609 = vadd.f32 %v608, 0.0036580483
    %v610 = vmul.f32 %v605, %v609
    %v611 = vadd.f32 %v610, 0.05243302
    %v612 = vmul.f32 %v605, %v611
    %v613 = vadd.f32 %v612, 0.18741608
    %v614 = vmul.f32 %v605, %v613
    %v615 = vadd.f32 %v614, 1.1283791
    %v616 = vmul.f32 %v563, %v615
    %v617 = vmul.f32 %v605, 3.8918573e-05
    %v618 = vadd.f32 %v617, 0.001143296
    %v619 = vmul.f32 %v605, %v618
    %v620 = vadd.f32 %v619, 0.014752088
    %v621 = vmul.f32 %v605, %v620
    %v622 = vadd.f32 %v621, 0.112945676
    %v623 = vmul.f32 %v605, %v622
    %v624 = vadd.f32 %v623, 0.4994258
    %v625 = vmul.f32 %v605, %v624
    %v626 = vadd.f32 %v625, 1.0
    %v627 = vrcp.pop %v626
    %v628 = vmul.f32 %v626, %v627
    %v629 = vsub.f32 1.0, %v628
    %v630 = vmul.f32 %v627, %v629
    %v631 = vadd.f32 %v627, %v630
    %vm632 = vweird.f32 %v626
    %vm633 = vweird.f32 %v627
    %vm634 = vmor %vm632, %vm633
    %v635 = vsel %vm634, %v627, %v631
    %v636 = vand.u32 2147483647, %v626
    %vm637 = vcmp.eq.f32.partialorder %v636, 8.507059e+37
    %v638 = vand.u32 %v626, 2147483648
    %v639 = vor.u32 1.1754944e-38, %v638
    %v640 = vsel %vm637, %v639, %v635
    %v641 = vmul.f32 %v616, %v640
    %v642 = vmin.f32 %v641, 1.0
    %v643 = vmax.f32 %v642, -1.0
    %v644 = vadd.f32 %v603, 1.0
    %v645 = vadd.f32 %v643, 1.0
    %v646 = vmul.f32 %v560, %v644
    %v647 = vmul.f32 %v561, %v645
    %v648 = vld [vmem:[%s12] sm:$0xf]
    %v649 = vld [vmem:[%s12 + $0x4] sm:$0xf]
    %v650 = vld [vmem:[%s12 + $0x8] sm:$0xf]
    %v651 = vld [vmem:[%s12 + $0xc] sm:$0xf]
    %v652 = vld [vmem:[%s12 + $0x10] sm:$0xf]
    %v653 = vld [vmem:[%s12 + $0x14] sm:$0xf]
    %v654 = vld [vmem:[%s12 + $0x18] sm:$0xf]
    %v655 = vld [vmem:[%s12 + $0x1c] sm:$0xf]
    %v656 = vpack.c.bf16 %v647, %v646
    %v657 = vld [vmem:[%s13] sm:$0x1]
    %v659 = vperm.slane %v657, 0
    %v669 = vunpack.c.l.b16 %v648
    %v670 = vunpack.c.l.b16 %v649
    %v671 = vunpack.c.l.b16 %v650
    %v672 = vunpack.c.l.b16 %v651
    %v673 = vunpack.c.l.b16 %v652
    %v674 = vunpack.c.l.b16 %v653
    %v675 = vunpack.c.l.b16 %v654
    %v676 = vunpack.c.l.b16 %v655
    %v677 = vpack.c.b16 %v670, %v669
    %v678 = vpack.c.b16 %v672, %v671
    %v679 = vpack.c.b16 %v674, %v673
    %v680 = vpack.c.b16 %v676, %v675
    %vm685 = vcmask 523264
    %v687 = vsel %vm685, %v656, 0
    %689 = vmatpush.bf16.msra.mxu0 0
    %690 = vmatpush.bf16.msra.mxu0 0
    %691 = vmatpush.bf16.msra.mxu0 0
    %692 = vmatpush.bf16.msra.mxu0 0
    %693 = vmatpush.bf16.msra.mxu0 %v680
    %694 = vmatpush.bf16.msra.mxu0 %v679
    %695 = vmatpush.bf16.msra.mxu0 %v678
    %696 = vmatpush.bf16.msra.mxu0 %v677
    %697 = vmatmul.bf16.gmra.mxu0 %v687
    %v698 = vpop.f32.mrf.mxu0
    %v699 = vadd.f32 %v659, %v698
    %v700 = vpop.f32.mrf.mxu0
    %v701 = vadd.f32 %v659, %v700
    %702 = vdwg.mxu0
    %v703 = vadd.f32 %v699, %v520
    %v704 = vadd.f32 %v701, %v521
    %v705 = vld [vmem:[%s14] sm:$0x1]
    %v706 = vld [vmem:[%s15] sm:$0x1]
    %v707 = vsel %vm71, %v703, 0.0
    %708 = vadd.xlane.f32.xlu0 %v707
    %v709 = vpop.xlane.xlu0 %708
    %v710 = vsel %vm71, %v704, 0.0
    %711 = vadd.xlane.f32.xlu0 %v710
    %v712 = vpop.xlane.xlu0 %711
    %v713 = vmul.f32 %v709, %v84
    %v714 = vmul.f32 %v712, %v84
    %v715 = vsub.f32 %v703, %v713
    %v716 = vsub.f32 %v704, %v714
    %v717 = vmul.f32 %v715, %v715
    %v718 = vmul.f32 %v716, %v716
    %v719 = vsel %vm71, %v717, 0.0
    %720 = vadd.xlane.f32.xlu0 %v719
    %v721 = vpop.xlane.xlu0 %720
    %v722 = vsel %vm71, %v718, 0.0
    %723 = vadd.xlane.f32.xlu0 %v722
    %v724 = vpop.xlane.xlu0 %723
    %v725 = vmul.f32 %v721, %v84
    %v726 = vmul.f32 %v724, %v84
    %v727 = vadd.f32 %v725, 1e-12
    %v728 = vadd.f32 %v726, 1e-12
    %v729 = vrsqrt.pop %v727
    %v730 = vmul.f32 %v729, %v727
    %v731 = vmul.f32 %v730, %v729
    %v732 = vmul.f32 0.5, %v731
    %v733 = vsub.f32 1.5, %v732
    %v734 = vmul.f32 %v729, %v733
    %vm735 = vweird.f32 %v727
    %vm736 = vweird.f32 %v729
    %vm737 = vmor %vm735, %vm736
    %v738 = vsel %vm737, %v729, %v734
    %v739 = vrsqrt.pop %v728
    %v740 = vmul.f32 %v739, %v728
    %v741 = vmul.f32 %v740, %v739
    %v742 = vmul.f32 0.5, %v741
    %v743 = vsub.f32 1.5, %v742
    %v744 = vmul.f32 %v739, %v743
    %vm745 = vweird.f32 %v728
    %vm746 = vweird.f32 %v739
    %vm747 = vmor %vm745, %vm746
    %v748 = vsel %vm747, %v739, %v744
    %v749 = vmul.f32 %v715, %v738
    %v750 = vmul.f32 %v716, %v748
    %v752 = vperm.slane %v705, 0
    %v754 = vmul.f32 %v749, %v752
    %v755 = vmul.f32 %v750, %v752
    %v757 = vperm.slane %v706, 0
    %v759 = vadd.f32 %v754, %v757
    %v760 = vadd.f32 %v755, %v757
    %s761 = scalar_lea.vmem %s4, 16
    %v762 = vld [vmem:[%s761] sm:$0xf]
    %v763 = vld [vmem:[%s761 + $0x4] sm:$0xf]
    %v764 = vld [vmem:[%s761 + $0x8] sm:$0xf]
    %v765 = vld [vmem:[%s761 + $0xc] sm:$0xf]
    %v766 = vpack.c.bf16 %v760, %v759
    %s767 = scalar_lea.vmem %s5, 1
    %v768 = vld [vmem:[%s767] sm:$0x1]
    %v770 = vperm.slane %v768, 0
    %v776 = vunpack.c.l.b16 %v762
    %v777 = vunpack.c.l.b16 %v763
    %v778 = vunpack.c.l.b16 %v764
    %v779 = vunpack.c.l.b16 %v765
    %v780 = vpack.c.b16 %v777, %v776
    %v781 = vpack.c.b16 %v779, %v778
    %v785 = vsel %vm71, %v766, 0
    %787 = vmatpush.bf16.msra.mxu0 0
    %788 = vmatpush.bf16.msra.mxu0 0
    %789 = vmatpush.bf16.msra.mxu0 0
    %790 = vmatpush.bf16.msra.mxu0 0
    %791 = vmatpush.bf16.msra.mxu0 0
    %792 = vmatpush.bf16.msra.mxu0 0
    %793 = vmatpush.bf16.msra.mxu0 %v781
    %794 = vmatpush.bf16.msra.mxu0 %v780
    %795 = vmatmul.bf16.gmra.mxu0 %v785
    %v796 = vpop.f32.mrf.mxu0
    %v797 = vadd.f32 %v770, %v796
    %v798 = vpop.f32.mrf.mxu0
    %v799 = vadd.f32 %v770, %v798
    %800 = vdwg.mxu0
    %v801 = vpack.c.bf16 %v797, %v797
    %803 = vrot.lane.b32.xlu0 %v801, 96
    %v804 = vpop.permute.xlu0 %803
    %v806 = vsel %vm178, %v801, 0
    %v809 = vsel %vm178, %v804, 0
    %811 = vmatpush.bf16.xpose.msra.mxu0 0
    %812 = vmatpush.bf16.xpose.msra.mxu0 0
    %813 = vmatpush.bf16.xpose.msra.mxu0 0
    %814 = vmatpush.bf16.xpose.msra.mxu0 0
    %815 = vmatpush.bf16.xpose.msra.mxu0 0
    %816 = vmatpush.bf16.xpose.msra.mxu0 0
    %817 = vmatpush.bf16.xpose.msra.mxu0 0
    %818 = vmatpush.bf16.xpose.msra.mxu0 %v809
    %819 = vmatmul.bf16.gmra.mxu0 %v806
    %v820 = vpop.f32.mrf.mxu0
    %v821 = vadd.f32 0.0, %v820
    %v822 = vpop.f32.mrf.mxu0
    %823 = vdwg.mxu0
    %v824 = vmul.f32 %v821, 0.25
    %v825 = vadd.f32 %v824, %v199
    %v826 = vsel %vm201, %v825, -inf
    %827 = vmax.xlane.f32.xlu0 %v826
    %v828 = vpop.xlane.xlu0 %827
    %v829 = vsub.f32 %v825, %v828
    %v830 = vmul.f32 %v829, 1.442695
    %v831 = vpow.pop %v830
    %v832 = vsel %vm201, %v831, 0.0
    %833 = vadd.xlane.f32.xlu0 %v832
    %v834 = vpop.xlane.xlu0 %833
    %v835 = vrcp.pop %v834
    %v836 = vmul.f32 %v831, %v835
    %v837 = vpack.c.bf16 %v836, %v836
    %838 = vrot.lane.b32.xlu0 %v801, 64
    %v839 = vpop.permute.xlu0 %838
    %v841 = vsel %vm201, %v837, 0
    %v844 = vsel %vm219, %v839, 0
    %846 = vmatpush.bf16.msra.mxu0 0
    %847 = vmatpush.bf16.msra.mxu0 0
    %848 = vmatpush.bf16.msra.mxu0 0
    %849 = vmatpush.bf16.msra.mxu0 0
    %850 = vmatpush.bf16.msra.mxu0 0
    %851 = vmatpush.bf16.msra.mxu0 0
    %852 = vmatpush.bf16.msra.mxu0 0
    %853 = vmatpush.bf16.msra.mxu0 %v844
    %854 = vmatmul.bf16.gmra.mxu0 %v841
    %v855 = vpop.f32.mrf.mxu0
    %v856 = vadd.f32 0.0, %v855
    %v857 = vpop.f32.mrf.mxu0
    %858 = vdwg.mxu0
    %859 = vst.msk [vmem:[#allocation2] sm:$0xff] %vm178, %v856
    %860 = vrot.lane.b32.xlu0 %v801, 112
    %v861 = vpop.permute.xlu0 %860
    %862 = vrot.lane.b32.xlu0 %v801, 80
    %v863 = vpop.permute.xlu0 %862
    %v865 = vsel %vm178, %v861, 0
    %v868 = vsel %vm178, %v863, 0
    %870 = vmatpush.bf16.xpose.msra.mxu0 0
    %871 = vmatpush.bf16.xpose.msra.mxu0 0
    %872 = vmatpush.bf16.xpose.msra.mxu0 0
    %873 = vmatpush.bf16.xpose.msra.mxu0 0
    %874 = vmatpush.bf16.xpose.msra.mxu0 0
    %875 = vmatpush.bf16.xpose.msra.mxu0 0
    %876 = vmatpush.bf16.xpose.msra.mxu0 0
    %877 = vmatpush.bf16.xpose.msra.mxu0 %v868
    %878 = vmatmul.bf16.gmra.mxu0 %v865
    %v879 = vpop.f32.mrf.mxu0
    %v880 = vadd.f32 0.0, %v879
    %v881 = vpop.f32.mrf.mxu0
    %882 = vdwg.mxu0
    %v883 = vmul.f32 %v880, 0.25
    %v884 = vadd.f32 %v883, %v199
    %v885 = vsel %vm201, %v884, -inf
    %886 = vmax.xlane.f32.xlu0 %v885
    %v887 = vpop.xlane.xlu0 %886
    %v888 = vsub.f32 %v884, %v887
    %v889 = vmul.f32 %v888, 1.442695
    %v890 = vpow.pop %v889
    %v891 = vsel %vm201, %v890, 0.0
    %892 = vadd.xlane.f32.xlu0 %v891
    %v893 = vpop.xlane.xlu0 %892
    %v894 = vrcp.pop %v893
    %v895 = vmul.f32 %v890, %v894
    %v896 = vpack.c.bf16 %v895, %v895
    %897 = vrot.lane.b32.xlu0 %v801, 48
    %v898 = vpop.permute.xlu0 %897
    %v900 = vsel %vm201, %v896, 0
    %v903 = vsel %vm219, %v898, 0
    %905 = vmatpush.bf16.msra.mxu0 0
    %906 = vmatpush.bf16.msra.mxu0 0
    %907 = vmatpush.bf16.msra.mxu0 0
    %908 = vmatpush.bf16.msra.mxu0 0
    %909 = vmatpush.bf16.msra.mxu0 0
    %910 = vmatpush.bf16.msra.mxu0 0
    %911 = vmatpush.bf16.msra.mxu0 0
    %912 = vmatpush.bf16.msra.mxu0 %v903
    %913 = vmatmul.bf16.gmra.mxu0 %v900
    %v914 = vpop.f32.mrf.mxu0
    %v915 = vadd.f32 0.0, %v914
    %v916 = vpop.f32.mrf.mxu0
    %917 = vdwg.mxu0
    %919 = vrot.lane.b32.xlu0 %v915, 16
    %v920 = vpop.permute.xlu0 %919
    %922 = vst.msk [vmem:[#allocation2] sm:$0xff] %vm299, %v920
    %v923 = vpack.c.bf16 %v799, %v799
    %925 = vrot.lane.b32.xlu0 %v923, 96
    %v926 = vpop.permute.xlu0 %925
    %v928 = vsel %vm178, %v923, 0
    %v931 = vsel %vm178, %v926, 0
    %933 = vmatpush.bf16.xpose.msra.mxu0 0
    %934 = vmatpush.bf16.xpose.msra.mxu0 0
    %935 = vmatpush.bf16.xpose.msra.mxu0 0
    %936 = vmatpush.bf16.xpose.msra.mxu0 0
    %937 = vmatpush.bf16.xpose.msra.mxu0 0
    %938 = vmatpush.bf16.xpose.msra.mxu0 0
    %939 = vmatpush.bf16.xpose.msra.mxu0 0
    %940 = vmatpush.bf16.xpose.msra.mxu0 %v931
    %941 = vmatmul.bf16.gmra.mxu0 %v928
    %v942 = vpop.f32.mrf.mxu0
    %v943 = vadd.f32 0.0, %v942
    %v944 = vpop.f32.mrf.mxu0
    %945 = vdwg.mxu0
    %v946 = vmul.f32 %v943, 0.25
    %v947 = vadd.f32 %v946, %v325
    %v948 = vsel %vm201, %v947, -inf
    %949 = vmax.xlane.f32.xlu0 %v948
    %v950 = vpop.xlane.xlu0 %949
    %v951 = vsub.f32 %v947, %v950
    %v952 = vmul.f32 %v951, 1.442695
    %v953 = vpow.pop %v952
    %v954 = vsel %vm201, %v953, 0.0
    %955 = vadd.xlane.f32.xlu0 %v954
    %v956 = vpop.xlane.xlu0 %955
    %v957 = vrcp.pop %v956
    %v958 = vmul.f32 %v953, %v957
    %v959 = vpack.c.bf16 %v958, %v958
    %960 = vrot.lane.b32.xlu0 %v923, 64
    %v961 = vpop.permute.xlu0 %960
    %v963 = vsel %vm201, %v959, 0
    %v966 = vsel %vm219, %v961, 0
    %968 = vmatpush.bf16.msra.mxu0 0
    %969 = vmatpush.bf16.msra.mxu0 0
    %970 = vmatpush.bf16.msra.mxu0 0
    %971 = vmatpush.bf16.msra.mxu0 0
    %972 = vmatpush.bf16.msra.mxu0 0
    %973 = vmatpush.bf16.msra.mxu0 0
    %974 = vmatpush.bf16.msra.mxu0 0
    %975 = vmatpush.bf16.msra.mxu0 %v966
    %976 = vmatmul.bf16.gmra.mxu0 %v963
    %v977 = vpop.f32.mrf.mxu0
    %v978 = vadd.f32 0.0, %v977
    %v979 = vpop.f32.mrf.mxu0
    %980 = vdwg.mxu0
    %981 = vst.msk [vmem:[#allocation2 + $0x8] sm:$0xff] %vm178, %v978
    %982 = vrot.lane.b32.xlu0 %v923, 112
    %v983 = vpop.permute.xlu0 %982
    %984 = vrot.lane.b32.xlu0 %v923, 80
    %v985 = vpop.permute.xlu0 %984
    %v987 = vsel %vm178, %v983, 0
    %v990 = vsel %vm178, %v985, 0
    %992 = vmatpush.bf16.xpose.msra.mxu0 0
    %993 = vmatpush.bf16.xpose.msra.mxu0 0
    %994 = vmatpush.bf16.xpose.msra.mxu0 0
    %995 = vmatpush.bf16.xpose.msra.mxu0 0
    %996 = vmatpush.bf16.xpose.msra.mxu0 0
    %997 = vmatpush.bf16.xpose.msra.mxu0 0
    %998 = vmatpush.bf16.xpose.msra.mxu0 0
    %999 = vmatpush.bf16.xpose.msra.mxu0 %v990
    %1000 = vmatmul.bf16.gmra.mxu0 %v987
    %v1001 = vpop.f32.mrf.mxu0
    %v1002 = vadd.f32 0.0, %v1001
    %v1003 = vpop.f32.mrf.mxu0
    %1004 = vdwg.mxu0
    %v1005 = vmul.f32 %v1002, 0.25
    %v1006 = vadd.f32 %v1005, %v325
    %v1007 = vsel %vm201, %v1006, -inf
    %1008 = vmax.xlane.f32.xlu0 %v1007
    %v1009 = vpop.xlane.xlu0 %1008
    %v1010 = vsub.f32 %v1006, %v1009
    %v1011 = vmul.f32 %v1010, 1.442695
    %v1012 = vpow.pop %v1011
    %v1013 = vsel %vm201, %v1012, 0.0
    %1014 = vadd.xlane.f32.xlu0 %v1013
    %v1015 = vpop.xlane.xlu0 %1014
    %v1016 = vrcp.pop %v1015
    %v1017 = vmul.f32 %v1012, %v1016
    %v1018 = vpack.c.bf16 %v1017, %v1017
    %1019 = vrot.lane.b32.xlu0 %v923, 48
    %v1020 = vpop.permute.xlu0 %1019
    %v1022 = vsel %vm201, %v1018, 0
    %v1025 = vsel %vm219, %v1020, 0
    %1027 = vmatpush.bf16.msra.mxu0 0
    %1028 = vmatpush.bf16.msra.mxu0 0
    %1029 = vmatpush.bf16.msra.mxu0 0
    %1030 = vmatpush.bf16.msra.mxu0 0
    %1031 = vmatpush.bf16.msra.mxu0 0
    %1032 = vmatpush.bf16.msra.mxu0 0
    %1033 = vmatpush.bf16.msra.mxu0 0
    %1034 = vmatpush.bf16.msra.mxu0 %v1025
    %1035 = vmatmul.bf16.gmra.mxu0 %v1022
    %v1036 = vpop.f32.mrf.mxu0
    %v1037 = vadd.f32 0.0, %v1036
    %v1038 = vpop.f32.mrf.mxu0
    %1039 = vdwg.mxu0
    %1041 = vrot.lane.b32.xlu0 %v1037, 16
    %v1042 = vpop.permute.xlu0 %1041
    %1044 = vst.msk [vmem:[#allocation2 + $0x8] sm:$0xff] %vm299, %v1042
    %v1045 = vld [vmem:[#allocation2] sm:$0xff]
    %v1046 = vld [vmem:[#allocation2 + $0x8] sm:$0xff]
    %s1047 = scalar_lea.vmem %s6, 16
    %v1048 = vld [vmem:[%s1047] sm:$0xf]
    %v1049 = vld [vmem:[%s1047 + $0x4] sm:$0xf]
    %v1050 = vld [vmem:[%s1047 + $0x8] sm:$0xf]
    %v1051 = vld [vmem:[%s1047 + $0xc] sm:$0xf]
    %v1052 = vpack.c.bf16 %v1046, %v1045
    %s1053 = scalar_lea.vmem %s7, 1
    %v1054 = vld [vmem:[%s1053] sm:$0x1]
    %v1056 = vperm.slane %v1054, 0
    %v1062 = vunpack.c.l.b16 %v1048
    %v1063 = vunpack.c.l.b16 %v1049
    %v1064 = vunpack.c.l.b16 %v1050
    %v1065 = vunpack.c.l.b16 %v1051
    %v1066 = vpack.c.b16 %v1063, %v1062
    %v1067 = vpack.c.b16 %v1065, %v1064
    %v1071 = vsel %vm71, %v1052, 0
    %1073 = vmatpush.bf16.msra.mxu0 0
    %1074 = vmatpush.bf16.msra.mxu0 0
    %1075 = vmatpush.bf16.msra.mxu0 0
    %1076 = vmatpush.bf16.msra.mxu0 0
    %1077 = vmatpush.bf16.msra.mxu0 0
    %1078 = vmatpush.bf16.msra.mxu0 0
    %1079 = vmatpush.bf16.msra.mxu0 %v1067
    %1080 = vmatpush.bf16.msra.mxu0 %v1066
    %1081 = vmatmul.bf16.gmra.mxu0 %v1071
    %v1082 = vpop.f32.mrf.mxu0
    %v1083 = vadd.f32 %v1056, %v1082
    %v1084 = vpop.f32.mrf.mxu0
    %v1085 = vadd.f32 %v1056, %v1084
    %1086 = vdwg.mxu0
    %v1087 = vadd.f32 %v1083, %v759
    %v1088 = vadd.f32 %v1085, %v760
    %s1089 = scalar_lea.vmem %s8, 1
    %v1090 = vld [vmem:[%s1089] sm:$0x1]
    %s1091 = scalar_lea.vmem %s9, 1
    %v1092 = vld [vmem:[%s1091] sm:$0x1]
    %v1093 = vsel %vm71, %v1087, 0.0
    %1094 = vadd.xlane.f32.xlu0 %v1093
    %v1095 = vpop.xlane.xlu0 %1094
    %v1096 = vsel %vm71, %v1088, 0.0
    %1097 = vadd.xlane.f32.xlu0 %v1096
    %v1098 = vpop.xlane.xlu0 %1097
    %v1099 = vmul.f32 %v1095, %v84
    %v1100 = vmul.f32 %v1098, %v84
    %v1101 = vsub.f32 %v1087, %v1099
    %v1102 = vsub.f32 %v1088, %v1100
    %v1103 = vmul.f32 %v1101, %v1101
    %v1104 = vmul.f32 %v1102, %v1102
    %v1105 = vsel %vm71, %v1103, 0.0
    %1106 = vadd.xlane.f32.xlu0 %v1105
    %v1107 = vpop.xlane.xlu0 %1106
    %v1108 = vsel %vm71, %v1104, 0.0
    %1109 = vadd.xlane.f32.xlu0 %v1108
    %v1110 = vpop.xlane.xlu0 %1109
    %v1111 = vmul.f32 %v1107, %v84
    %v1112 = vmul.f32 %v1110, %v84
    %v1113 = vadd.f32 %v1111, 1e-12
    %v1114 = vadd.f32 %v1112, 1e-12
    %v1115 = vrsqrt.pop %v1113
    %v1116 = vmul.f32 %v1115, %v1113
    %v1117 = vmul.f32 %v1116, %v1115
    %v1118 = vmul.f32 0.5, %v1117
    %v1119 = vsub.f32 1.5, %v1118
    %v1120 = vmul.f32 %v1115, %v1119
    %vm1121 = vweird.f32 %v1113
    %vm1122 = vweird.f32 %v1115
    %vm1123 = vmor %vm1121, %vm1122
    %v1124 = vsel %vm1123, %v1115, %v1120
    %v1125 = vrsqrt.pop %v1114
    %v1126 = vmul.f32 %v1125, %v1114
    %v1127 = vmul.f32 %v1126, %v1125
    %v1128 = vmul.f32 0.5, %v1127
    %v1129 = vsub.f32 1.5, %v1128
    %v1130 = vmul.f32 %v1125, %v1129
    %vm1131 = vweird.f32 %v1114
    %vm1132 = vweird.f32 %v1125
    %vm1133 = vmor %vm1131, %vm1132
    %v1134 = vsel %vm1133, %v1125, %v1130
    %v1135 = vmul.f32 %v1101, %v1124
    %v1136 = vmul.f32 %v1102, %v1134
    %v1138 = vperm.slane %v1090, 0
    %v1140 = vmul.f32 %v1135, %v1138
    %v1141 = vmul.f32 %v1136, %v1138
    %v1143 = vperm.slane %v1092, 0
    %v1145 = vadd.f32 %v1140, %v1143
    %v1146 = vadd.f32 %v1141, %v1143
    %s1147 = scalar_lea.vmem %s10, 16
    %v1148 = vld [vmem:[%s1147] sm:$0xf]
    %v1149 = vld [vmem:[%s1147 + $0x4] sm:$0xf]
    %v1150 = vld [vmem:[%s1147 + $0x8] sm:$0xf]
    %v1151 = vld [vmem:[%s1147 + $0xc] sm:$0xf]
    %v1152 = vpack.c.bf16 %v1146, %v1145
    %s1153 = scalar_lea.vmem %s11, 1
    %v1154 = vld [vmem:[%s1153] sm:$0x1]
    %v1156 = vperm.slane %v1154, 0
    %v1162 = vunpack.c.l.b16 %v1148
    %v1163 = vunpack.c.l.b16 %v1149
    %v1164 = vunpack.c.l.b16 %v1150
    %v1165 = vunpack.c.l.b16 %v1151
    %v1166 = vpack.c.b16 %v1163, %v1162
    %v1167 = vpack.c.b16 %v1165, %v1164
    %v1171 = vsel %vm71, %v1152, 0
    %1173 = vmatpush.bf16.msra.mxu0 0
    %1174 = vmatpush.bf16.msra.mxu0 0
    %1175 = vmatpush.bf16.msra.mxu0 0
    %1176 = vmatpush.bf16.msra.mxu0 0
    %1177 = vmatpush.bf16.msra.mxu0 0
    %1178 = vmatpush.bf16.msra.mxu0 0
    %1179 = vmatpush.bf16.msra.mxu0 %v1167
    %1180 = vmatpush.bf16.msra.mxu0 %v1166
    %1181 = vmatmul.bf16.gmra.mxu0 %v1171
    %v1182 = vpop.f32.mrf.mxu0
    %v1183 = vadd.f32 %v1156, %v1182
    %v1184 = vpop.f32.mrf.mxu0
    %v1185 = vadd.f32 %v1156, %v1184
    %1186 = vdwg.mxu0
    %v1187 = vmul.f32 %v1183, 0.5
    %v1188 = vmul.f32 %v1185, 0.5
    %v1189 = vmul.f32 %v1183, 0.70710677
    %v1190 = vmul.f32 %v1185, 0.70710677
    %v1191 = vmul.f32 %v1189, %v1189
    %v1192 = vmin.f32 16.0, %v1191
    %v1193 = vmul.f32 %v1192, 2.1237322e-06
    %v1194 = vadd.f32 %v1193, 0.00028619796
    %v1195 = vmul.f32 %v1192, %v1194
    %v1196 = vadd.f32 %v1195, 0.0036580483
    %v1197 = vmul.f32 %v1192, %v1196
    %v1198 = vadd.f32 %v1197, 0.05243302
    %v1199 = vmul.f32 %v1192, %v1198
    %v1200 = vadd.f32 %v1199, 0.18741608
    %v1201 = vmul.f32 %v1192, %v1200
    %v1202 = vadd.f32 %v1201, 1.1283791
    %v1203 = vmul.f32 %v1189, %v1202
    %v1204 = vmul.f32 %v1192, 3.8918573e-05
    %v1205 = vadd.f32 %v1204, 0.001143296
    %v1206 = vmul.f32 %v1192, %v1205
    %v1207 = vadd.f32 %v1206, 0.014752088
    %v1208 = vmul.f32 %v1192, %v1207
    %v1209 = vadd.f32 %v1208, 0.112945676
    %v1210 = vmul.f32 %v1192, %v1209
    %v1211 = vadd.f32 %v1210, 0.4994258
    %v1212 = vmul.f32 %v1192, %v1211
    %v1213 = vadd.f32 %v1212, 1.0
    %v1214 = vrcp.pop %v1213
    %v1215 = vmul.f32 %v1213, %v1214
    %v1216 = vsub.f32 1.0, %v1215
    %v1217 = vmul.f32 %v1214, %v1216
    %v1218 = vadd.f32 %v1214, %v1217
    %vm1219 = vweird.f32 %v1213
    %vm1220 = vweird.f32 %v1214
    %vm1221 = vmor %vm1219, %vm1220
    %v1222 = vsel %vm1221, %v1214, %v1218
    %v1223 = vand.u32 2147483647, %v1213
    %vm1224 = vcmp.eq.f32.partialorder %v1223, 8.507059e+37
    %v1225 = vand.u32 %v1213, 2147483648
    %v1226 = vor.u32 1.1754944e-38, %v1225
    %v1227 = vsel %vm1224, %v1226, %v1222
    %v1228 = vmul.f32 %v1203, %v1227
    %v1229 = vmin.f32 %v1228, 1.0
    %v1230 = vmax.f32 %v1229, -1.0
    %v1231 = vmul.f32 %v1190, %v1190
    %v1232 = vmin.f32 16.0, %v1231
    %v1233 = vmul.f32 %v1232, 2.1237322e-06
    %v1234 = vadd.f32 %v1233, 0.00028619796
    %v1235 = vmul.f32 %v1232, %v1234
    %v1236 = vadd.f32 %v1235, 0.0036580483
    %v1237 = vmul.f32 %v1232, %v1236
    %v1238 = vadd.f32 %v1237, 0.05243302
    %v1239 = vmul.f32 %v1232, %v1238
    %v1240 = vadd.f32 %v1239, 0.18741608
    %v1241 = vmul.f32 %v1232, %v1240
    %v1242 = vadd.f32 %v1241, 1.1283791
    %v1243 = vmul.f32 %v1190, %v1242
    %v1244 = vmul.f32 %v1232, 3.8918573e-05
    %v1245 = vadd.f32 %v1244, 0.001143296
    %v1246 = vmul.f32 %v1232, %v1245
    %v1247 = vadd.f32 %v1246, 0.014752088
    %v1248 = vmul.f32 %v1232, %v1247
    %v1249 = vadd.f32 %v1248, 0.112945676
    %v1250 = vmul.f32 %v1232, %v1249
    %v1251 = vadd.f32 %v1250, 0.4994258
    %v1252 = vmul.f32 %v1232, %v1251
    %v1253 = vadd.f32 %v1252, 1.0
    %v1254 = vrcp.pop %v1253
    %v1255 = vmul.f32 %v1253, %v1254
    %v1256 = vsub.f32 1.0, %v1255
    %v1257 = vmul.f32 %v1254, %v1256
    %v1258 = vadd.f32 %v1254, %v1257
    %vm1259 = vweird.f32 %v1253
    %vm1260 = vweird.f32 %v1254
    %vm1261 = vmor %vm1259, %vm1260
    %v1262 = vsel %vm1261, %v1254, %v1258
    %v1263 = vand.u32 2147483647, %v1253
    %vm1264 = vcmp.eq.f32.partialorder %v1263, 8.507059e+37
    %v1265 = vand.u32 %v1253, 2147483648
    %v1266 = vor.u32 1.1754944e-38, %v1265
    %v1267 = vsel %vm1264, %v1266, %v1262
    %v1268 = vmul.f32 %v1243, %v1267
    %v1269 = vmin.f32 %v1268, 1.0
    %v1270 = vmax.f32 %v1269, -1.0
    %v1271 = vadd.f32 %v1230, 1.0
    %v1272 = vadd.f32 %v1270, 1.0
    %v1273 = vmul.f32 %v1187, %v1271
    %v1274 = vmul.f32 %v1188, %v1272
    %s1275 = scalar_lea.vmem %s12, 32
    %v1276 = vld [vmem:[%s1275] sm:$0xf]
    %v1277 = vld [vmem:[%s1275 + $0x4] sm:$0xf]
    %v1278 = vld [vmem:[%s1275 + $0x8] sm:$0xf]
    %v1279 = vld [vmem:[%s1275 + $0xc] sm:$0xf]
    %v1280 = vld [vmem:[%s1275 + $0x10] sm:$0xf]
    %v1281 = vld [vmem:[%s1275 + $0x14] sm:$0xf]
    %v1282 = vld [vmem:[%s1275 + $0x18] sm:$0xf]
    %v1283 = vld [vmem:[%s1275 + $0x1c] sm:$0xf]
    %v1284 = vpack.c.bf16 %v1274, %v1273
    %s1285 = scalar_lea.vmem %s13, 1
    %v1286 = vld [vmem:[%s1285] sm:$0x1]
    %v1288 = vperm.slane %v1286, 0
    %v1298 = vunpack.c.l.b16 %v1276
    %v1299 = vunpack.c.l.b16 %v1277
    %v1300 = vunpack.c.l.b16 %v1278
    %v1301 = vunpack.c.l.b16 %v1279
    %v1302 = vunpack.c.l.b16 %v1280
    %v1303 = vunpack.c.l.b16 %v1281
    %v1304 = vunpack.c.l.b16 %v1282
    %v1305 = vunpack.c.l.b16 %v1283
    %v1306 = vpack.c.b16 %v1299, %v1298
    %v1307 = vpack.c.b16 %v1301, %v1300
    %v1308 = vpack.c.b16 %v1303, %v1302
    %v1309 = vpack.c.b16 %v1305, %v1304
    %v1315 = vsel %vm685, %v1284, 0
    %1317 = vmatpush.bf16.msra.mxu0 0
    %1318 = vmatpush.bf16.msra.mxu0 0
    %1319 = vmatpush.bf16.msra.mxu0 0
    %1320 = vmatpush.bf16.msra.mxu0 0
    %1321 = vmatpush.bf16.msra.mxu0 %v1309
    %1322 = vmatpush.bf16.msra.mxu0 %v1308
    %1323 = vmatpush.bf16.msra.mxu0 %v1307
    %1324 = vmatpush.bf16.msra.mxu0 %v1306
    %1325 = vmatmul.bf16.gmra.mxu0 %v1315
    %v1326 = vpop.f32.mrf.mxu0
    %v1327 = vadd.f32 %v1288, %v1326
    %v1328 = vpop.f32.mrf.mxu0
    %v1329 = vadd.f32 %v1288, %v1328
    %1330 = vdwg.mxu0
    %v1331 = vadd.f32 %v1327, %v1145
    %v1332 = vadd.f32 %v1329, %v1146
    %s1333 = scalar_lea.vmem %s14, 1
    %v1334 = vld [vmem:[%s1333] sm:$0x1]
    %s1335 = scalar_lea.vmem %s15, 1
    %v1336 = vld [vmem:[%s1335] sm:$0x1]
    %v1337 = vsel %vm71, %v1331, 0.0
    %1338 = vadd.xlane.f32.xlu0 %v1337
    %v1339 = vpop.xlane.xlu0 %1338
    %v1340 = vsel %vm71, %v1332, 0.0
    %1341 = vadd.xlane.f32.xlu0 %v1340
    %v1342 = vpop.xlane.xlu0 %1341
    %v1343 = vmul.f32 %v1339, %v84
    %v1344 = vmul.f32 %v1342, %v84
    %v1345 = vsub.f32 %v1331, %v1343
    %v1346 = vsub.f32 %v1332, %v1344
    %v1347 = vmul.f32 %v1345, %v1345
    %v1348 = vmul.f32 %v1346, %v1346
    %v1349 = vsel %vm71, %v1347, 0.0
    %1350 = vadd.xlane.f32.xlu0 %v1349
    %v1351 = vpop.xlane.xlu0 %1350
    %v1352 = vsel %vm71, %v1348, 0.0
    %1353 = vadd.xlane.f32.xlu0 %v1352
    %v1354 = vpop.xlane.xlu0 %1353
    %v1355 = vmul.f32 %v1351, %v84
    %v1356 = vmul.f32 %v1354, %v84
    %v1357 = vadd.f32 %v1355, 1e-12
    %v1358 = vadd.f32 %v1356, 1e-12
    %v1359 = vrsqrt.pop %v1357
    %v1360 = vmul.f32 %v1359, %v1357
    %v1361 = vmul.f32 %v1360, %v1359
    %v1362 = vmul.f32 0.5, %v1361
    %v1363 = vsub.f32 1.5, %v1362
    %v1364 = vmul.f32 %v1359, %v1363
    %vm1365 = vweird.f32 %v1357
    %vm1366 = vweird.f32 %v1359
    %vm1367 = vmor %vm1365, %vm1366
    %v1368 = vsel %vm1367, %v1359, %v1364
    %v1369 = vrsqrt.pop %v1358
    %v1370 = vmul.f32 %v1369, %v1358
    %v1371 = vmul.f32 %v1370, %v1369
    %v1372 = vmul.f32 0.5, %v1371
    %v1373 = vsub.f32 1.5, %v1372
    %v1374 = vmul.f32 %v1369, %v1373
    %vm1375 = vweird.f32 %v1358
    %vm1376 = vweird.f32 %v1369
    %vm1377 = vmor %vm1375, %vm1376
    %v1378 = vsel %vm1377, %v1369, %v1374
    %v1379 = vmul.f32 %v1345, %v1368
    %v1380 = vmul.f32 %v1346, %v1378
    %v1382 = vperm.slane %v1334, 0
    %v1384 = vmul.f32 %v1379, %v1382
    %v1385 = vmul.f32 %v1380, %v1382
    %v1387 = vperm.slane %v1336, 0
    %v1389 = vadd.f32 %v1384, %v1387
    %v1390 = vadd.f32 %v1385, %v1387
    %v1391 = vld [vmem:[%s16] sm:$0xf]
    %v1392 = vld [vmem:[%s16 + $0x4] sm:$0xf]
    %v1393 = vld [vmem:[%s16 + $0x8] sm:$0xf]
    %v1394 = vld [vmem:[%s16 + $0xc] sm:$0xf]
    %v1395 = vpack.c.bf16 %v1389, %v1389
    %v1396 = vld [vmem:[%s17] sm:$0x1]
    %v1401 = vunpack.c.l.b16 %v1391
    %v1402 = vunpack.c.l.b16 %v1392
    %v1403 = vunpack.c.l.b16 %v1393
    %v1404 = vunpack.c.l.b16 %v1394
    %v1405 = vpack.c.b16 %v1402, %v1401
    %v1406 = vpack.c.b16 %v1404, %v1403
    %v1410 = vsel %vm71, %v1395, 0
    %1412 = vmatpush.bf16.msra.mxu0 0
    %1413 = vmatpush.bf16.msra.mxu0 0
    %1414 = vmatpush.bf16.msra.mxu0 0
    %1415 = vmatpush.bf16.msra.mxu0 0
    %1416 = vmatpush.bf16.msra.mxu0 0
    %1417 = vmatpush.bf16.msra.mxu0 0
    %1418 = vmatpush.bf16.msra.mxu0 %v1406
    %1419 = vmatpush.bf16.msra.mxu0 %v1405
    %1420 = vmatmul.bf16.gmra.mxu0 %v1410
    %v1421 = vpop.f32.mrf.mxu0
    %v1422 = vadd.f32 %v1396, %v1421
    %v1423 = vpop.f32.mrf.mxu0
    %1424 = vdwg.mxu0
    %v1425 = vtanh.pop %v1422
    %v1426 = vld [vmem:[%s18] sm:$0xf]
    %v1427 = vld [vmem:[%s18 + $0x4] sm:$0xf]
    %v1428 = vld [vmem:[%s18 + $0x8] sm:$0xf]
    %v1429 = vld [vmem:[%s18 + $0xc] sm:$0xf]
    %v1430 = vpack.c.bf16 %v1425, %v1425
    %v1431 = vld [vmem:[%s19] sm:$0x1]
    %v1436 = vunpack.c.l.b16 %v1426
    %v1437 = vunpack.c.l.b16 %v1427
    %v1438 = vunpack.c.l.b16 %v1428
    %v1439 = vunpack.c.l.b16 %v1429
    %v1440 = vpack.c.b16 %v1437, %v1436
    %v1441 = vpack.c.b16 %v1439, %v1438
    %v1445 = vsel %vm71, %v1430, 0
    %1447 = vmatpush.bf16.msra.mxu0 0
    %1448 = vmatpush.bf16.msra.mxu0 0
    %1449 = vmatpush.bf16.msra.mxu0 0
    %1450 = vmatpush.bf16.msra.mxu0 0
    %1451 = vmatpush.bf16.msra.mxu0 0
    %1452 = vmatpush.bf16.msra.mxu0 0
    %1453 = vmatpush.bf16.msra.mxu0 %v1441
    %1454 = vmatpush.bf16.msra.mxu0 %v1440
    %1455 = vmatmul.bf16.gmra.mxu0 %v1445
    %v1456 = vpop.f32.mrf.mxu0
    %v1457 = vadd.f32 %v1431, %v1456
    %v1458 = vpop.f32.mrf.mxu0
    %1459 = vdwg.mxu0
    %vm1460 = vcmask 16384
    %1461 = vst.msk [vmem:[#allocation3] sm:$0x1] %vm1460, %v1457
    %v1462 = vld [vmem:[%s16] sm:$0xf]
    %v1463 = vld [vmem:[%s16 + $0x4] sm:$0xf]
    %v1464 = vld [vmem:[%s16 + $0x8] sm:$0xf]
    %v1465 = vld [vmem:[%s16 + $0xc] sm:$0xf]
    %v1466 = vpack.c.bf16 %v1390, %v1390
    %v1467 = vld [vmem:[%s17] sm:$0x1]
    %v1472 = vunpack.c.l.b16 %v1462
    %v1473 = vunpack.c.l.b16 %v1463
    %v1474 = vunpack.c.l.b16 %v1464
    %v1475 = vunpack.c.l.b16 %v1465
    %v1476 = vpack.c.b16 %v1473, %v1472
    %v1477 = vpack.c.b16 %v1475, %v1474
    %v1481 = vsel %vm71, %v1466, 0
    %1483 = vmatpush.bf16.msra.mxu0 0
    %1484 = vmatpush.bf16.msra.mxu0 0
    %1485 = vmatpush.bf16.msra.mxu0 0
    %1486 = vmatpush.bf16.msra.mxu0 0
    %1487 = vmatpush.bf16.msra.mxu0 0
    %1488 = vmatpush.bf16.msra.mxu0 0
    %1489 = vmatpush.bf16.msra.mxu0 %v1477
    %1490 = vmatpush.bf16.msra.mxu0 %v1476
    %1491 = vmatmul.bf16.gmra.mxu0 %v1481
    %v1492 = vpop.f32.mrf.mxu0
    %v1493 = vadd.f32 %v1467, %v1492
    %v1494 = vpop.f32.mrf.mxu0
    %1495 = vdwg.mxu0
    %v1496 = vtanh.pop %v1493
    %v1497 = vld [vmem:[%s18] sm:$0xf]
    %v1498 = vld [vmem:[%s18 + $0x4] sm:$0xf]
    %v1499 = vld [vmem:[%s18 + $0x8] sm:$0xf]
    %v1500 = vld [vmem:[%s18 + $0xc] sm:$0xf]
    %v1501 = vpack.c.bf16 %v1496, %v1496
    %v1502 = vld [vmem:[%s19] sm:$0x1]
    %v1507 = vunpack.c.l.b16 %v1497
    %v1508 = vunpack.c.l.b16 %v1498
    %v1509 = vunpack.c.l.b16 %v1499
    %v1510 = vunpack.c.l.b16 %v1500
    %v1511 = vpack.c.b16 %v1508, %v1507
    %v1512 = vpack.c.b16 %v1510, %v1509
    %v1516 = vsel %vm71, %v1501, 0
    %1518 = vmatpush.bf16.msra.mxu0 0
    %1519 = vmatpush.bf16.msra.mxu0 0
    %1520 = vmatpush.bf16.msra.mxu0 0
    %1521 = vmatpush.bf16.msra.mxu0 0
    %1522 = vmatpush.bf16.msra.mxu0 0
    %1523 = vmatpush.bf16.msra.mxu0 0
    %1524 = vmatpush.bf16.msra.mxu0 %v1512
    %1525 = vmatpush.bf16.msra.mxu0 %v1511
    %1526 = vmatmul.bf16.gmra.mxu0 %v1516
    %v1527 = vpop.f32.mrf.mxu0
    %v1528 = vadd.f32 %v1502, %v1527
    %v1529 = vpop.f32.mrf.mxu0
    %1530 = vdwg.mxu0
    %1531 = vst.msk [vmem:[#allocation3 + $0x1] sm:$0x1] %vm1460, %v1528
    // Predicated region
    $region82: #{bert_classifier_forward.1} parent=1 // pred_check
      _
    $region83: #{bert_classifier_forward.1} parent=1 // pred_check_branch
      %1533 = sbr.rel (0) target = $region85
    $region84: #{bert_classifier_forward.1} parent=1 // pred_region
      %1535 = vsyncadd [#allocation4], 0
      %s1537 = sshll.u32 [#allocation3], 4
      %s1538 = int_to_ptr.vmem [resolvable:$true] %s1537
      %s1539 = sshll.u32 %s20, 4
      %s1540 = int_to_ptr.hbm [resolvable:$true] %s1539
      %1542 = dma.vmem_to_hbm [thread:$0]  %s1538, 32, %s1540, [#allocation4]
    $region85: #{bert_classifier_forward.1} parent=1 // pred_fallthru
      _
    // Predicated region
    $region86: #{bert_classifier_forward.1} parent=1 // pred_check
      _
    $region87: #{bert_classifier_forward.1} parent=1 // pred_check_branch
      %1544 = sbr.rel (0) target = $region89
    $region88: #{bert_classifier_forward.1} parent=1 // pred_region
      %1546 = dma.done [#allocation4], 32
    $region89: #{bert_classifier_forward.1} parent=1 // pred_fallthru
      _
    %1547 = vsyncpa [#allocation4], 1

</llo_original>
